<compile_context>
chip_gen: v7x
topology: tpu7x:2x2x1
jax: 0.10.0
libtpu: 0.0.40
codegen_flags: <defaults>
</compile_context>

<pallas_src>
import numpy as np

import jax
import jax.numpy as jnp
from jax.experimental import pallas as pl
from jax.experimental.pallas import tpu as pltpu

# ----------------------- configuration (mirrors __init__) -------------------
INPUT_WINDOW_SIZE = 3
S = 1 + 2 * INPUT_WINDOW_SIZE          # in_scale = 7
QFEAT = S * S                          # 49
FEAT = 5 * QFEAT                       # 245
PAD = 256                              # lane-dense feature width
BATCH = 2                              # batch_size
NOISE_VAR = 0.1
ELU_ALPHA = 2.0
WH_LEN = 256


def _elu(x):
    # torch.nn.ELU(alpha=2.0); exp is clamped so the unselected branch never
    # produces inf/NaN.
    return jnp.where(x > 0, x, ELU_ALPHA * (jnp.exp(jnp.minimum(x, 0.0)) - 1.0))


# ------------------------- fused Pallas kernel -------------------------------
def _disc_kernel(x_ref, st_ref, mc_ref, bc_ref,
                 w0_ref, b0_ref, w1_ref, b1_ref,
                 wf_ref, bf_ref, wh_ref, bh_ref,
                 wo_ref, bo_ref, out_ref):
    f32 = jnp.float32

    def mm(a, w):
        # bf16 x bf16 MXU matmul, f32 accumulate.
        return jnp.dot(a.astype(jnp.bfloat16), w, preferred_element_type=f32)

    x = x_ref[...]                                      # [B, 256] f32 (noisy input)

    # one fused matmul per conv block: [B,256] @ [256, 512] = [conv1x1 | conv3x3]
    def conv_pair(layer, inp):
        y = _elu(mm(inp, mc_ref[layer]) + bc_ref[layer])   # [B, 512]
        return y[:, :PAD], y[:, PAD:]

    e1, e3 = conv_pair(0, x)
    xa = e1 + e3
    e1, e3 = conv_pair(1, xa)
    xb = (e1 + x) + (e3 + x)
    e1, e3 = conv_pair(2, xb)
    xc = (e1 + xa) + (e3 + xa)
    e1, e3 = conv_pair(3, xc)
    xd = (e1 + xb) + (e3 + xb)                          # flattened xd, [B, 256]

    # space-time features; the Hadamard transform (/256) is pre-folded into w0.
    st = _elu(mm(st_ref[...], w0_ref[...]) + b0_ref[...])
    st = _elu(mm(st, w1_ref[...]) + b1_ref[...])

    h = _elu(mm(xd, wf_ref[...]) + bf_ref[...]) + st    # lin_fusion + space_time
    cat = _elu(mm(h, wh_ref[...]) + bh_ref[...])        # fused r|g|b|a|s heads

    logits = jnp.sum(cat * wo_ref[...], axis=1, keepdims=True) + bo_ref[...]
    out_ref[...] = 1.0 / (1.0 + jnp.exp(-logits))       # sigmoid


def _disc_call(x_flat, st, p):
    B = x_flat.shape[0]
    args = (x_flat, st, p["mc"], p["bc"], p["w0"], p["b0"], p["w1"], p["b1"],
            p["wf"], p["bf"], p["wh"], p["bh"], p["wo"], p["bo"])
    return pl.pallas_call(
        _disc_kernel,
        out_shape=jax.ShapeDtypeStruct((B, 1), jnp.float32),
        in_specs=[pl.BlockSpec(memory_space=pltpu.MemorySpace.VMEM)] * len(args),
        out_specs=pl.BlockSpec(memory_space=pltpu.MemorySpace.VMEM),
    )(*args)


# ------------------------- parameter setup (glue) ---------------------------
def _hadamard_matrix(n):
    idx = np.arange(n)
    anded = idx[:, None] & idx[None, :]
    popc = np.vectorize(lambda v: bin(int(v)).count("1"))(anded)
    return np.where(popc % 2 == 0, 1.0, -1.0).astype(np.float64)


def _sigma(w2d, iters=50):
    # converged power iteration (PyTorch spectral_norm keeps a persistent
    # random `u` with one iteration per forward; this is its fixed point).
    w2d = np.asarray(w2d, dtype=np.float64)
    u = np.ones((w2d.shape[0],)) / np.sqrt(w2d.shape[0])
    v = np.ones((w2d.shape[1],)) / np.sqrt(w2d.shape[1])
    for _ in range(iters):
        u = w2d @ v
        u = u / (np.linalg.norm(u) + 1e-12)
        v = w2d.T @ u
        v = v / (np.linalg.norm(v) + 1e-12)
    return float(u @ (w2d @ v))


def _pad2(m, rows=PAD, cols=PAD):
    out = np.zeros((rows, cols), np.float64)
    out[:m.shape[0], :m.shape[1]] = m
    return out


def _padrow(b, n=PAD):
    out = np.zeros((1, n), np.float64)
    out[0, :b.shape[0]] = b
    return out


def init_params(key):
    ks = jax.random.split(key, 12)

    def normal(k, shape, std=0.1):
        return np.asarray(std * jax.random.normal(k, shape, jnp.float32), np.float64)

    # conv weights, torch layout [layer, out, in, (kh, kw)], spectral-normed
    w1 = normal(ks[0], (4, 5, 5))
    w3 = normal(ks[1], (4, 5, 5, 3, 3))
    w1 = np.stack([w1[l] / _sigma(w1[l].reshape(5, -1)) for l in range(4)])
    w3 = np.stack([w3[l] / _sigma(w3[l].reshape(5, -1)) for l in range(4)])
    b1 = np.full((4, 5), 0.01)
    b3 = np.full((4, 5), 0.01)

    # Build dense [245,245] operators acting on flattened NCHW (idx = c*49+y*7+x),
    # pad to 256 and concatenate [conv1x1 | conv3x3] along the output axis.
    eye_q = np.eye(QFEAT)
    mc_layers, bc_layers = [], []
    for l in range(4):
        M1 = np.kron(w1[l].T, eye_q)                    # 1x1 conv as matmul
        M3 = np.zeros((FEAT, FEAT))
        for o in range(5):
            for c in range(5):
                for ky in range(3):
                    for kx in range(3):
                        w = w3[l, o, c, ky, kx]
                        for y in range(S):
                            iy = y + ky - 1
                            if iy < 0 or iy >= S:
                                continue
                            for xx in range(S):
                                ix = xx + kx - 1
                                if ix < 0 or ix >= S:
                                    continue
                                M3[c * QFEAT + iy * S + ix,
                                   o * QFEAT + y * S + xx] += w
        mc_layers.append(np.concatenate([_pad2(M1), _pad2(M3)], axis=1))
        bc_layers.append(np.concatenate([_padrow(np.repeat(b1[l], QFEAT)),
                                         _padrow(np.repeat(b3[l], QFEAT))], axis=1))

    p = {}
    p["mc"] = jnp.asarray(np.stack(mc_layers), jnp.bfloat16)   # [4, 256, 512]
    p["bc"] = jnp.asarray(np.stack(bc_layers), jnp.float32)    # [4, 1, 512]

    def linear(kw, n_in, n_out, spectral=False):
        w = np.asarray(0.1 * jax.random.normal(kw, (n_out, n_in), jnp.float32),
                       np.float64)                              # torch [out, in]
        if spectral:
            w = w / _sigma(w)
        b = np.full((n_out,), 0.01)
        return w.T, b                                           # store [in, out]

    H = _hadamard_matrix(WH_LEN) / float(WH_LEN)

    w0, b0 = linear(ks[2], WH_LEN, FEAT)
    p["w0"] = jnp.asarray(_pad2(H @ w0), jnp.bfloat16)          # Hadamard folded in
    p["b0"] = jnp.asarray(_padrow(b0), jnp.float32)

    w1wh, b1wh = linear(ks[3], FEAT, FEAT)
    p["w1"] = jnp.asarray(_pad2(w1wh), jnp.bfloat16)
    p["b1"] = jnp.asarray(_padrow(b1wh), jnp.float32)

    wf, bf = linear(ks[4], FEAT, FEAT)
    p["wf"] = jnp.asarray(_pad2(wf), jnp.bfloat16)
    p["bf"] = jnp.asarray(_padrow(bf), jnp.float32)

    heads = [linear(ks[5 + i], FEAT, QFEAT) for i in range(5)]  # r, g, b, a, s
    p["wh"] = jnp.asarray(_pad2(np.concatenate([hw for hw, _ in heads], axis=1)),
                          jnp.bfloat16)
    p["bh"] = jnp.asarray(_padrow(np.concatenate([hb for _, hb in heads])),
                          jnp.float32)

    wo, bo = linear(ks[10], FEAT, 1, spectral=True)
    p["wo"] = jnp.asarray(_padrow(wo[:, 0]), jnp.float32)       # [1, 256] reduction row
    p["bo"] = jnp.asarray(bo.reshape(1, 1), jnp.float32)
    return p


# ------------------------- forward (glue + fused kernel) ---------------------
@jax.jit
def discriminator_forward(params, disc_data, g_model_data, shuffle_idx, noise_key):
    (_, _, _mih1, mih2, mih3, _, _, meta_in, t_stamps, perm_bin,
     _moh1, moh2, moh3, _, _, meta_out) = g_model_data

    mih2 = jnp.concatenate([mih2, mih2], 0)[shuffle_idx].astype(jnp.float32)
    mih3 = jnp.concatenate([mih3, mih3], 0)[shuffle_idx].astype(jnp.float32)
    meta_in_c = jnp.concatenate([meta_in, t_stamps, perm_bin, meta_in], 0)[shuffle_idx]
    moh2 = jnp.concatenate([moh2, moh2], 0)[shuffle_idx].astype(jnp.float32)
    moh3 = jnp.concatenate([moh3, moh3], 0)[shuffle_idx].astype(jnp.float32)
    meta_out_c = jnp.concatenate([meta_out, meta_out], 0)[shuffle_idx]

    meta_central_points = jnp.concatenate([mih3, moh3], axis=1)
    meta = jnp.concatenate([meta_in_c, meta_out_c], axis=1)
    meta_step = jnp.concatenate([mih2, moh2], axis=1)

    x = disc_data[shuffle_idx]
    noise = NOISE_VAR * jax.random.uniform(noise_key, x.shape, jnp.float32)
    x = x + jnp.nan_to_num(noise, nan=0.0)

    st = jnp.concatenate([meta_central_points, meta_step, meta], axis=1)
    B = st.shape[0]
    st = jnp.pad(st, ((0, 0), (0, WH_LEN - st.shape[1])))        # [B, 256]

    # flatten NCHW -> [B, 245] (== torch.flatten(x, 1) layout), pad to 256 lanes
    x_flat = x.reshape(B, FEAT)
    x_flat = jnp.pad(x_flat, ((0, 0), (0, PAD - FEAT)))

    return _disc_call(x_flat, st, params)


# ------------------------- demo ----------------------------------------------
if __name__ == "__main__":
    key = jax.random.PRNGKey(0)
    kp, kd, km, kn = jax.random.split(key, 4)
    params = init_params(kp)

    B0 = 2                                   # per-source meta batch
    disc_data = jax.random.normal(kd, (2 * B0, 5, S, S), jnp.float32)

    mk = jax.random.split(km, 8)
    meta_input_h2 = jax.random.normal(mk[0], (B0, 4), jnp.float32)
    meta_input_h3 = jax.random.normal(mk[1], (B0, 4), jnp.float32)
    meta_in = jax.random.normal(mk[2], (B0, 20), jnp.float32)
    t_stamps = jax.random.normal(mk[3], (B0, 20), jnp.float32)
    perm_bin = (jax.random.uniform(mk[4], (B0, 20)) > 0.5).astype(jnp.float32)
    meta_output_h2 = jax.random.normal(mk[5], (B0, 4), jnp.float32)
    meta_output_h3 = jax.random.normal(mk[6], (B0, 4), jnp.float32)
    meta_out = jax.random.normal(mk[7], (B0, 20), jnp.float32)

    z = jnp.zeros((B0, 1), jnp.float32)      # unused slots of g_model_data
    g_model_data = (z, z, z, meta_input_h2, meta_input_h3, z, z, meta_in,
                    t_stamps, perm_bin, z, meta_output_h2, meta_output_h3,
                    z, z, meta_out)
    shuffle_idx = jnp.array([3, 1], dtype=jnp.int32)

    out = discriminator_forward(params, disc_data, g_model_data, shuffle_idx, kn)
    out = jax.block_until_ready(out)
    assert out.shape == (BATCH, 1), out.shape
    assert bool(jnp.all(jnp.isfinite(out)))
    assert bool(jnp.all((out >= 0.0) & (out <= 1.0)))
    print("KERNEL_OK")
</pallas_src>

<mosaic_0001>
module attributes {stable_mosaic.version = 11 : i64} {
  func.func @_disc_kernel(%arg0: memref<2x256xf32, #tpu.memory_space<vmem>>, %arg1: memref<2x256xf32, #tpu.memory_space<vmem>>, %arg2: memref<4x256x512xbf16, #tpu.memory_space<vmem>>, %arg3: memref<4x1x512xf32, #tpu.memory_space<vmem>>, %arg4: memref<256x256xbf16, #tpu.memory_space<vmem>>, %arg5: memref<1x256xf32, #tpu.memory_space<vmem>>, %arg6: memref<256x256xbf16, #tpu.memory_space<vmem>>, %arg7: memref<1x256xf32, #tpu.memory_space<vmem>>, %arg8: memref<256x256xbf16, #tpu.memory_space<vmem>>, %arg9: memref<1x256xf32, #tpu.memory_space<vmem>>, %arg10: memref<256x256xbf16, #tpu.memory_space<vmem>>, %arg11: memref<1x256xf32, #tpu.memory_space<vmem>>, %arg12: memref<1x256xf32, #tpu.memory_space<vmem>>, %arg13: memref<1x1xf32, #tpu.memory_space<vmem>>, %arg14: memref<2x1xf32, #tpu.memory_space<vmem>>) attributes {dimension_semantics = [], scalar_prefetch = 0 : i64, scratch_operands = 0 : i64, tpu.core_type = #tpu.core_type<tc>} {
    %c0 = arith.constant 0 : index
    %c0_0 = arith.constant 0 : index
    %0 = vector.load %arg0[%c0, %c0_0] : memref<2x256xf32, #tpu.memory_space<vmem>>, vector<2x256xf32>
    %c0_1 = arith.constant 0 : index
    %c0_2 = arith.constant 0 : index
    %c0_3 = arith.constant 0 : index
    %1 = vector.load %arg2[%c0_1, %c0_2, %c0_3] : memref<4x256x512xbf16, #tpu.memory_space<vmem>>, vector<1x256x512xbf16>
    %2 = vector.shape_cast %1 : vector<1x256x512xbf16> to vector<256x512xbf16>
    %3 = arith.truncf %0 : vector<2x256xf32> to vector<2x256xbf16>
    %cst = arith.constant dense<0.000000e+00> : vector<2x512xf32>
    %4 = tpu.matmul %3, %2, %cst {dimension_numbers = #tpu.dot_dimension_numbers<[1], [0], [0], [1], [0, 0, 1, 1], [], []>} : vector<2x256xbf16>, vector<256x512xbf16>, vector<2x512xf32> -> vector<2x512xf32>
    %c0_4 = arith.constant 0 : index
    %c0_5 = arith.constant 0 : index
    %c0_6 = arith.constant 0 : index
    %5 = vector.load %arg3[%c0_4, %c0_5, %c0_6] : memref<4x1x512xf32, #tpu.memory_space<vmem>>, vector<1x1x512xf32>
    %6 = vector.shape_cast %5 : vector<1x1x512xf32> to vector<1x512xf32>
    %7 = vector.broadcast %6 : vector<1x512xf32> to vector<2x512xf32>
    %8 = arith.addf %4, %7 : vector<2x512xf32>
    %cst_7 = arith.constant 0.000000e+00 : f32
    %9 = vector.broadcast %cst_7 : f32 to vector<2x512xf32>
    %10 = arith.cmpf ogt, %8, %9 : vector<2x512xf32>
    %cst_8 = arith.constant 0.000000e+00 : f32
    %11 = vector.broadcast %cst_8 : f32 to vector<2x512xf32>
    %12 = arith.minimumf %8, %11 : vector<2x512xf32>
    %13 = math.exp %12 : vector<2x512xf32>
    %cst_9 = arith.constant 1.000000e+00 : f32
    %14 = vector.broadcast %cst_9 : f32 to vector<2x512xf32>
    %15 = arith.subf %13, %14 : vector<2x512xf32>
    %cst_10 = arith.constant 2.000000e+00 : f32
    %16 = vector.broadcast %cst_10 : f32 to vector<2x512xf32>
    %17 = arith.mulf %16, %15 : vector<2x512xf32>
    %18 = arith.select %10, %8, %17 : vector<2x512xi1>, vector<2x512xf32>
    %19 = vector.extract_strided_slice %18 {offsets = [0, 0], sizes = [2, 256], strides = [1, 1]} : vector<2x512xf32> to vector<2x256xf32>
    %20 = vector.extract_strided_slice %18 {offsets = [0, 256], sizes = [2, 256], strides = [1, 1]} : vector<2x512xf32> to vector<2x256xf32>
    %21 = arith.addf %19, %20 : vector<2x256xf32>
    %c1 = arith.constant 1 : index
    %c0_11 = arith.constant 0 : index
    %c0_12 = arith.constant 0 : index
    %22 = vector.load %arg2[%c1, %c0_11, %c0_12] : memref<4x256x512xbf16, #tpu.memory_space<vmem>>, vector<1x256x512xbf16>
    %23 = vector.shape_cast %22 : vector<1x256x512xbf16> to vector<256x512xbf16>
    %24 = arith.truncf %21 : vector<2x256xf32> to vector<2x256xbf16>
    %cst_13 = arith.constant dense<0.000000e+00> : vector<2x512xf32>
    %25 = tpu.matmul %24, %23, %cst_13 {dimension_numbers = #tpu.dot_dimension_numbers<[1], [0], [0], [1], [0, 0, 1, 1], [], []>} : vector<2x256xbf16>, vector<256x512xbf16>, vector<2x512xf32> -> vector<2x512xf32>
    %c1_14 = arith.constant 1 : index
    %c0_15 = arith.constant 0 : index
    %c0_16 = arith.constant 0 : index
    %26 = vector.load %arg3[%c1_14, %c0_15, %c0_16] : memref<4x1x512xf32, #tpu.memory_space<vmem>>, vector<1x1x512xf32>
    %27 = vector.shape_cast %26 : vector<1x1x512xf32> to vector<1x512xf32>
    %28 = vector.broadcast %27 : vector<1x512xf32> to vector<2x512xf32>
    %29 = arith.addf %25, %28 : vector<2x512xf32>
    %cst_17 = arith.constant 0.000000e+00 : f32
    %30 = vector.broadcast %cst_17 : f32 to vector<2x512xf32>
    %31 = arith.cmpf ogt, %29, %30 : vector<2x512xf32>
    %cst_18 = arith.constant 0.000000e+00 : f32
    %32 = vector.broadcast %cst_18 : f32 to vector<2x512xf32>
    %33 = arith.minimumf %29, %32 : vector<2x512xf32>
    %34 = math.exp %33 : vector<2x512xf32>
    %cst_19 = arith.constant 1.000000e+00 : f32
    %35 = vector.broadcast %cst_19 : f32 to vector<2x512xf32>
    %36 = arith.subf %34, %35 : vector<2x512xf32>
    %cst_20 = arith.constant 2.000000e+00 : f32
    %37 = vector.broadcast %cst_20 : f32 to vector<2x512xf32>
    %38 = arith.mulf %37, %36 : vector<2x512xf32>
    %39 = arith.select %31, %29, %38 : vector<2x512xi1>, vector<2x512xf32>
    %40 = vector.extract_strided_slice %39 {offsets = [0, 0], sizes = [2, 256], strides = [1, 1]} : vector<2x512xf32> to vector<2x256xf32>
    %41 = vector.extract_strided_slice %39 {offsets = [0, 256], sizes = [2, 256], strides = [1, 1]} : vector<2x512xf32> to vector<2x256xf32>
    %42 = arith.addf %40, %0 : vector<2x256xf32>
    %43 = arith.addf %41, %0 : vector<2x256xf32>
    %44 = arith.addf %42, %43 : vector<2x256xf32>
    %c2 = arith.constant 2 : index
    %c0_21 = arith.constant 0 : index
    %c0_22 = arith.constant 0 : index
    %45 = vector.load %arg2[%c2, %c0_21, %c0_22] : memref<4x256x512xbf16, #tpu.memory_space<vmem>>, vector<1x256x512xbf16>
    %46 = vector.shape_cast %45 : vector<1x256x512xbf16> to vector<256x512xbf16>
    %47 = arith.truncf %44 : vector<2x256xf32> to vector<2x256xbf16>
    %cst_23 = arith.constant dense<0.000000e+00> : vector<2x512xf32>
    %48 = tpu.matmul %47, %46, %cst_23 {dimension_numbers = #tpu.dot_dimension_numbers<[1], [0], [0], [1], [0, 0, 1, 1], [], []>} : vector<2x256xbf16>, vector<256x512xbf16>, vector<2x512xf32> -> vector<2x512xf32>
    %c2_24 = arith.constant 2 : index
    %c0_25 = arith.constant 0 : index
    %c0_26 = arith.constant 0 : index
    %49 = vector.load %arg3[%c2_24, %c0_25, %c0_26] : memref<4x1x512xf32, #tpu.memory_space<vmem>>, vector<1x1x512xf32>
    %50 = vector.shape_cast %49 : vector<1x1x512xf32> to vector<1x512xf32>
    %51 = vector.broadcast %50 : vector<1x512xf32> to vector<2x512xf32>
    %52 = arith.addf %48, %51 : vector<2x512xf32>
    %cst_27 = arith.constant 0.000000e+00 : f32
    %53 = vector.broadcast %cst_27 : f32 to vector<2x512xf32>
    %54 = arith.cmpf ogt, %52, %53 : vector<2x512xf32>
    %cst_28 = arith.constant 0.000000e+00 : f32
    %55 = vector.broadcast %cst_28 : f32 to vector<2x512xf32>
    %56 = arith.minimumf %52, %55 : vector<2x512xf32>
    %57 = math.exp %56 : vector<2x512xf32>
    %cst_29 = arith.constant 1.000000e+00 : f32
    %58 = vector.broadcast %cst_29 : f32 to vector<2x512xf32>
    %59 = arith.subf %57, %58 : vector<2x512xf32>
    %cst_30 = arith.constant 2.000000e+00 : f32
    %60 = vector.broadcast %cst_30 : f32 to vector<2x512xf32>
    %61 = arith.mulf %60, %59 : vector<2x512xf32>
    %62 = arith.select %54, %52, %61 : vector<2x512xi1>, vector<2x512xf32>
    %63 = vector.extract_strided_slice %62 {offsets = [0, 0], sizes = [2, 256], strides = [1, 1]} : vector<2x512xf32> to vector<2x256xf32>
    %64 = vector.extract_strided_slice %62 {offsets = [0, 256], sizes = [2, 256], strides = [1, 1]} : vector<2x512xf32> to vector<2x256xf32>
    %65 = arith.addf %63, %21 : vector<2x256xf32>
    %66 = arith.addf %64, %21 : vector<2x256xf32>
    %67 = arith.addf %65, %66 : vector<2x256xf32>
    %c3 = arith.constant 3 : index
    %c0_31 = arith.constant 0 : index
    %c0_32 = arith.constant 0 : index
    %68 = vector.load %arg2[%c3, %c0_31, %c0_32] : memref<4x256x512xbf16, #tpu.memory_space<vmem>>, vector<1x256x512xbf16>
    %69 = vector.shape_cast %68 : vector<1x256x512xbf16> to vector<256x512xbf16>
    %70 = arith.truncf %67 : vector<2x256xf32> to vector<2x256xbf16>
    %cst_33 = arith.constant dense<0.000000e+00> : vector<2x512xf32>
    %71 = tpu.matmul %70, %69, %cst_33 {dimension_numbers = #tpu.dot_dimension_numbers<[1], [0], [0], [1], [0, 0, 1, 1], [], []>} : vector<2x256xbf16>, vector<256x512xbf16>, vector<2x512xf32> -> vector<2x512xf32>
    %c3_34 = arith.constant 3 : index
    %c0_35 = arith.constant 0 : index
    %c0_36 = arith.constant 0 : index
    %72 = vector.load %arg3[%c3_34, %c0_35, %c0_36] : memref<4x1x512xf32, #tpu.memory_space<vmem>>, vector<1x1x512xf32>
    %73 = vector.shape_cast %72 : vector<1x1x512xf32> to vector<1x512xf32>
    %74 = vector.broadcast %73 : vector<1x512xf32> to vector<2x512xf32>
    %75 = arith.addf %71, %74 : vector<2x512xf32>
    %cst_37 = arith.constant 0.000000e+00 : f32
    %76 = vector.broadcast %cst_37 : f32 to vector<2x512xf32>
    %77 = arith.cmpf ogt, %75, %76 : vector<2x512xf32>
    %cst_38 = arith.constant 0.000000e+00 : f32
    %78 = vector.broadcast %cst_38 : f32 to vector<2x512xf32>
    %79 = arith.minimumf %75, %78 : vector<2x512xf32>
    %80 = math.exp %79 : vector<2x512xf32>
    %cst_39 = arith.constant 1.000000e+00 : f32
    %81 = vector.broadcast %cst_39 : f32 to vector<2x512xf32>
    %82 = arith.subf %80, %81 : vector<2x512xf32>
    %cst_40 = arith.constant 2.000000e+00 : f32
    %83 = vector.broadcast %cst_40 : f32 to vector<2x512xf32>
    %84 = arith.mulf %83, %82 : vector<2x512xf32>
    %85 = arith.select %77, %75, %84 : vector<2x512xi1>, vector<2x512xf32>
    %86 = vector.extract_strided_slice %85 {offsets = [0, 0], sizes = [2, 256], strides = [1, 1]} : vector<2x512xf32> to vector<2x256xf32>
    %87 = vector.extract_strided_slice %85 {offsets = [0, 256], sizes = [2, 256], strides = [1, 1]} : vector<2x512xf32> to vector<2x256xf32>
    %88 = arith.addf %86, %44 : vector<2x256xf32>
    %89 = arith.addf %87, %44 : vector<2x256xf32>
    %90 = arith.addf %88, %89 : vector<2x256xf32>
    %c0_41 = arith.constant 0 : index
    %c0_42 = arith.constant 0 : index
    %91 = vector.load %arg1[%c0_41, %c0_42] : memref<2x256xf32, #tpu.memory_space<vmem>>, vector<2x256xf32>
    %c0_43 = arith.constant 0 : index
    %c0_44 = arith.constant 0 : index
    %92 = vector.load %arg4[%c0_43, %c0_44] : memref<256x256xbf16, #tpu.memory_space<vmem>>, vector<256x256xbf16>
    %93 = arith.truncf %91 : vector<2x256xf32> to vector<2x256xbf16>
    %cst_45 = arith.constant dense<0.000000e+00> : vector<2x256xf32>
    %94 = tpu.matmul %93, %92, %cst_45 {dimension_numbers = #tpu.dot_dimension_numbers<[1], [0], [0], [1], [0, 0, 1, 1], [], []>} : vector<2x256xbf16>, vector<256x256xbf16>, vector<2x256xf32> -> vector<2x256xf32>
    %c0_46 = arith.constant 0 : index
    %c0_47 = arith.constant 0 : index
    %95 = vector.load %arg5[%c0_46, %c0_47] : memref<1x256xf32, #tpu.memory_space<vmem>>, vector<1x256xf32>
    %96 = vector.broadcast %95 : vector<1x256xf32> to vector<2x256xf32>
    %97 = arith.addf %94, %96 : vector<2x256xf32>
    %cst_48 = arith.constant 0.000000e+00 : f32
    %98 = vector.broadcast %cst_48 : f32 to vector<2x256xf32>
    %99 = arith.cmpf ogt, %97, %98 : vector<2x256xf32>
    %cst_49 = arith.constant 0.000000e+00 : f32
    %100 = vector.broadcast %cst_49 : f32 to vector<2x256xf32>
    %101 = arith.minimumf %97, %100 : vector<2x256xf32>
    %102 = math.exp %101 : vector<2x256xf32>
    %cst_50 = arith.constant 1.000000e+00 : f32
    %103 = vector.broadcast %cst_50 : f32 to vector<2x256xf32>
    %104 = arith.subf %102, %103 : vector<2x256xf32>
    %cst_51 = arith.constant 2.000000e+00 : f32
    %105 = vector.broadcast %cst_51 : f32 to vector<2x256xf32>
    %106 = arith.mulf %105, %104 : vector<2x256xf32>
    %107 = arith.select %99, %97, %106 : vector<2x256xi1>, vector<2x256xf32>
    %c0_52 = arith.constant 0 : index
    %c0_53 = arith.constant 0 : index
    %108 = vector.load %arg6[%c0_52, %c0_53] : memref<256x256xbf16, #tpu.memory_space<vmem>>, vector<256x256xbf16>
    %109 = arith.truncf %107 : vector<2x256xf32> to vector<2x256xbf16>
    %cst_54 = arith.constant dense<0.000000e+00> : vector<2x256xf32>
    %110 = tpu.matmul %109, %108, %cst_54 {dimension_numbers = #tpu.dot_dimension_numbers<[1], [0], [0], [1], [0, 0, 1, 1], [], []>} : vector<2x256xbf16>, vector<256x256xbf16>, vector<2x256xf32> -> vector<2x256xf32>
    %c0_55 = arith.constant 0 : index
    %c0_56 = arith.constant 0 : index
    %111 = vector.load %arg7[%c0_55, %c0_56] : memref<1x256xf32, #tpu.memory_space<vmem>>, vector<1x256xf32>
    %112 = vector.broadcast %111 : vector<1x256xf32> to vector<2x256xf32>
    %113 = arith.addf %110, %112 : vector<2x256xf32>
    %cst_57 = arith.constant 0.000000e+00 : f32
    %114 = vector.broadcast %cst_57 : f32 to vector<2x256xf32>
    %115 = arith.cmpf ogt, %113, %114 : vector<2x256xf32>
    %cst_58 = arith.constant 0.000000e+00 : f32
    %116 = vector.broadcast %cst_58 : f32 to vector<2x256xf32>
    %117 = arith.minimumf %113, %116 : vector<2x256xf32>
    %118 = math.exp %117 : vector<2x256xf32>
    %cst_59 = arith.constant 1.000000e+00 : f32
    %119 = vector.broadcast %cst_59 : f32 to vector<2x256xf32>
    %120 = arith.subf %118, %119 : vector<2x256xf32>
    %cst_60 = arith.constant 2.000000e+00 : f32
    %121 = vector.broadcast %cst_60 : f32 to vector<2x256xf32>
    %122 = arith.mulf %121, %120 : vector<2x256xf32>
    %123 = arith.select %115, %113, %122 : vector<2x256xi1>, vector<2x256xf32>
    %c0_61 = arith.constant 0 : index
    %c0_62 = arith.constant 0 : index
    %124 = vector.load %arg8[%c0_61, %c0_62] : memref<256x256xbf16, #tpu.memory_space<vmem>>, vector<256x256xbf16>
    %125 = arith.truncf %90 : vector<2x256xf32> to vector<2x256xbf16>
    %cst_63 = arith.constant dense<0.000000e+00> : vector<2x256xf32>
    %126 = tpu.matmul %125, %124, %cst_63 {dimension_numbers = #tpu.dot_dimension_numbers<[1], [0], [0], [1], [0, 0, 1, 1], [], []>} : vector<2x256xbf16>, vector<256x256xbf16>, vector<2x256xf32> -> vector<2x256xf32>
    %c0_64 = arith.constant 0 : index
    %c0_65 = arith.constant 0 : index
    %127 = vector.load %arg9[%c0_64, %c0_65] : memref<1x256xf32, #tpu.memory_space<vmem>>, vector<1x256xf32>
    %128 = vector.broadcast %127 : vector<1x256xf32> to vector<2x256xf32>
    %129 = arith.addf %126, %128 : vector<2x256xf32>
    %cst_66 = arith.constant 0.000000e+00 : f32
    %130 = vector.broadcast %cst_66 : f32 to vector<2x256xf32>
    %131 = arith.cmpf ogt, %129, %130 : vector<2x256xf32>
    %cst_67 = arith.constant 0.000000e+00 : f32
    %132 = vector.broadcast %cst_67 : f32 to vector<2x256xf32>
    %133 = arith.minimumf %129, %132 : vector<2x256xf32>
    %134 = math.exp %133 : vector<2x256xf32>
    %cst_68 = arith.constant 1.000000e+00 : f32
    %135 = vector.broadcast %cst_68 : f32 to vector<2x256xf32>
    %136 = arith.subf %134, %135 : vector<2x256xf32>
    %cst_69 = arith.constant 2.000000e+00 : f32
    %137 = vector.broadcast %cst_69 : f32 to vector<2x256xf32>
    %138 = arith.mulf %137, %136 : vector<2x256xf32>
    %139 = arith.select %131, %129, %138 : vector<2x256xi1>, vector<2x256xf32>
    %140 = arith.addf %139, %123 : vector<2x256xf32>
    %c0_70 = arith.constant 0 : index
    %c0_71 = arith.constant 0 : index
    %141 = vector.load %arg10[%c0_70, %c0_71] : memref<256x256xbf16, #tpu.memory_space<vmem>>, vector<256x256xbf16>
    %142 = arith.truncf %140 : vector<2x256xf32> to vector<2x256xbf16>
    %cst_72 = arith.constant dense<0.000000e+00> : vector<2x256xf32>
    %143 = tpu.matmul %142, %141, %cst_72 {dimension_numbers = #tpu.dot_dimension_numbers<[1], [0], [0], [1], [0, 0, 1, 1], [], []>} : vector<2x256xbf16>, vector<256x256xbf16>, vector<2x256xf32> -> vector<2x256xf32>
    %c0_73 = arith.constant 0 : index
    %c0_74 = arith.constant 0 : index
    %144 = vector.load %arg11[%c0_73, %c0_74] : memref<1x256xf32, #tpu.memory_space<vmem>>, vector<1x256xf32>
    %145 = vector.broadcast %144 : vector<1x256xf32> to vector<2x256xf32>
    %146 = arith.addf %143, %145 : vector<2x256xf32>
    %cst_75 = arith.constant 0.000000e+00 : f32
    %147 = vector.broadcast %cst_75 : f32 to vector<2x256xf32>
    %148 = arith.cmpf ogt, %146, %147 : vector<2x256xf32>
    %cst_76 = arith.constant 0.000000e+00 : f32
    %149 = vector.broadcast %cst_76 : f32 to vector<2x256xf32>
    %150 = arith.minimumf %146, %149 : vector<2x256xf32>
    %151 = math.exp %150 : vector<2x256xf32>
    %cst_77 = arith.constant 1.000000e+00 : f32
    %152 = vector.broadcast %cst_77 : f32 to vector<2x256xf32>
    %153 = arith.subf %151, %152 : vector<2x256xf32>
    %cst_78 = arith.constant 2.000000e+00 : f32
    %154 = vector.broadcast %cst_78 : f32 to vector<2x256xf32>
    %155 = arith.mulf %154, %153 : vector<2x256xf32>
    %156 = arith.select %148, %146, %155 : vector<2x256xi1>, vector<2x256xf32>
    %c0_79 = arith.constant 0 : index
    %c0_80 = arith.constant 0 : index
    %157 = vector.load %arg12[%c0_79, %c0_80] : memref<1x256xf32, #tpu.memory_space<vmem>>, vector<1x256xf32>
    %158 = vector.broadcast %157 : vector<1x256xf32> to vector<2x256xf32>
    %159 = arith.mulf %156, %158 : vector<2x256xf32>
    %cst_81 = arith.constant dense<0.000000e+00> : vector<2xf32>
    %160 = vector.multi_reduction <add>, %159, %cst_81 [1] : vector<2x256xf32> to vector<2xf32>
    %161 = vector.shape_cast %160 : vector<2xf32> to vector<2x1xf32>
    %c0_82 = arith.constant 0 : index
    %c0_83 = arith.constant 0 : index
    %162 = vector.load %arg13[%c0_82, %c0_83] : memref<1x1xf32, #tpu.memory_space<vmem>>, vector<1x1xf32>
    %163 = vector.broadcast %162 : vector<1x1xf32> to vector<2x1xf32>
    %164 = arith.addf %161, %163 : vector<2x1xf32>
    %cst_84 = arith.constant 0.000000e+00 : f32
    %165 = vector.broadcast %cst_84 : f32 to vector<2x1xf32>
    %166 = arith.subf %165, %164 : vector<2x1xf32>
    %167 = math.exp %166 : vector<2x1xf32>
    %cst_85 = arith.constant 1.000000e+00 : f32
    %168 = vector.broadcast %cst_85 : f32 to vector<2x1xf32>
    %169 = arith.addf %168, %167 : vector<2x1xf32>
    %cst_86 = arith.constant 1.000000e+00 : f32
    %170 = vector.broadcast %cst_86 : f32 to vector<2x1xf32>
    %171 = arith.divf %170, %169 : vector<2x1xf32>
    %c0_87 = arith.constant 0 : index
    %c0_88 = arith.constant 0 : index
    %172 = vector.load %arg14[%c0_87, %c0_88] : memref<2x1xf32, #tpu.memory_space<vmem>>, vector<2x1xf32>
    tpu.vector_store %arg14[%c0_87, %c0_88], %171 {strides = array<i32>} : memref<2x1xf32, #tpu.memory_space<vmem>>, vector<2x1xf32>,
    return
  }
}

</mosaic_0001>

<llo_original>
// kernel: discriminator_forward.1
$region0: #{discriminator_forward.1}
  #allocation0 [shape = 'u32[]', space=smem, size = 0x4, offset = 0x4, fixed_abs, tag = 'smem constant byte address 0x4 - core index']
  #allocation1 [shape = 'u32[144,128]{1,0:T(1,128)}', space=vmem, size = 0x12000, scoped, tag = 'internal scratch']
  #allocation2 [shape = 'f32[1,1]{1,0:T(1,128)S(1)}', space=vmem, size = 0x200, scoped, tag = 'scoped memory for discriminator_forward.1']
  %s0 = inlined_call_operand.vmem [shape: f32[2,256], index: 0, kind: input, shape index: {}]
  %s1 = inlined_call_operand.vmem [shape: f32[2,256], index: 1, kind: input, shape index: {}]
  %s2 = inlined_call_operand.hbm [shape: bf16[4,256,512], index: 2, kind: input, shape index: {}]
  %s3 = inlined_call_operand.vmem [shape: f32[4,1,512], index: 3, kind: input, shape index: {}]
  %s4 = inlined_call_operand.vmem [shape: bf16[256,256], index: 4, kind: input, shape index: {}]
  %s5 = inlined_call_operand.vmem [shape: f32[1,256], index: 5, kind: input, shape index: {}]
  %s6 = inlined_call_operand.vmem [shape: bf16[256,256], index: 6, kind: input, shape index: {}]
  %s7 = inlined_call_operand.vmem [shape: f32[1,256], index: 7, kind: input, shape index: {}]
  %s8 = inlined_call_operand.vmem [shape: bf16[256,256], index: 8, kind: input, shape index: {}]
  %s9 = inlined_call_operand.vmem [shape: f32[1,256], index: 9, kind: input, shape index: {}]
  %s10 = inlined_call_operand.vmem [shape: bf16[256,256], index: 10, kind: input, shape index: {}]
  %s11 = inlined_call_operand.vmem [shape: f32[1,256], index: 11, kind: input, shape index: {}]
  %s12 = inlined_call_operand.vmem [shape: f32[1,256], index: 12, kind: input, shape index: {}]
  %s13 = inlined_call_operand.<no memory space> [shape: f32[1,1], index: 13, kind: input, shape index: {}]
  %s14 = inlined_call_operand.vmem [shape: f32[2,1], index: 14, kind: output, shape index: {}]
  %s15 = sld [smem:[#allocation0]]
  $region70: #{discriminator_forward.1} parent=0
    _
  %s17 = ssub.s32 1, %s15
  %s18 = scalar_select 0, %s17, %s15
  %v19 = vstv %s13
  %20 = vst [vmem:[#allocation2] sm:$0x1] %v19
  $region1: #{discriminator_forward.1} parent=0
    #allocation3 [shape = 'u8[1048576]{0}', space=vmem, size = 0x100000, scoped, tag = 'input window, operand 2, single buffered']
    #allocation4 [shape = 's32[1]{0}', space=sflag, size = 0x4, scoped, tag = 'scoped memory for discriminator_forward.1']
    %21 = vsyncpa [#allocation4], 0
    // Predicated region
    $region2: #{discriminator_forward.1} parent=1 // pred_check
      _
    $region3: #{discriminator_forward.1} parent=1 // pred_check_branch
      %23 = sbr.rel (0) target = $region5
    $region4: #{discriminator_forward.1} parent=1 // pred_region
      _
    $region5: #{discriminator_forward.1} parent=1 // pred_fallthru
      _
    // Predicated region
    $region6: #{discriminator_forward.1} parent=1 // pred_check
      _
    $region7: #{discriminator_forward.1} parent=1 // pred_check_branch
      %25 = sbr.rel (0) target = $region9
    $region8: #{discriminator_forward.1} parent=1 // pred_region
      _
    $region9: #{discriminator_forward.1} parent=1 // pred_fallthru
      _
    // Predicated region
    $region10: #{discriminator_forward.1} parent=1 // pred_check
      _
    $region11: #{discriminator_forward.1} parent=1 // pred_check_branch
      %27 = sbr.rel (0) target = $region13
    $region12: #{discriminator_forward.1} parent=1 // pred_region
      %s29 = ssub.s32 32768, 32768
      %30 = vsyncadd [#allocation4], %s29
      %s31 = sshll.u32 [#allocation3], 4
      %s32 = int_to_ptr.vmem [resolvable:$true] %s31
      %37 = dma.hbm_to_vmem [thread:$0]  %s2, 32768, %s32, [#allocation4], 256, 256, 16
    $region13: #{discriminator_forward.1} parent=1 // pred_fallthru
      _
    // Predicated region
    $region14: #{discriminator_forward.1} parent=1 // pred_check
      _
    $region15: #{discriminator_forward.1} parent=1 // pred_check_branch
      %39 = sbr.rel (0) target = $region17
    $region16: #{discriminator_forward.1} parent=1 // pred_region
      _
    $region17: #{discriminator_forward.1} parent=1 // pred_fallthru
      _
    // Predicated region
    $region18: #{discriminator_forward.1} parent=1 // pred_check
      _
    $region19: #{discriminator_forward.1} parent=1 // pred_check_branch
      %41 = sbr.rel (0) target = $region21
    $region20: #{discriminator_forward.1} parent=1 // pred_region
      _
    $region21: #{discriminator_forward.1} parent=1 // pred_fallthru
      _
    // Predicated region
    $region22: #{discriminator_forward.1} parent=1 // pred_check
      _
    $region23: #{discriminator_forward.1} parent=1 // pred_check_branch
      %43 = sbr.rel (0) target = $region25
    $region24: #{discriminator_forward.1} parent=1 // pred_region
      _
    $region25: #{discriminator_forward.1} parent=1 // pred_fallthru
      _
    // Predicated region
    $region26: #{discriminator_forward.1} parent=1 // pred_check
      _
    $region27: #{discriminator_forward.1} parent=1 // pred_check_branch
      %45 = sbr.rel (0) target = $region29
    $region28: #{discriminator_forward.1} parent=1 // pred_region
      _
    $region29: #{discriminator_forward.1} parent=1 // pred_fallthru
      _
    // Predicated region
    $region30: #{discriminator_forward.1} parent=1 // pred_check
      _
    $region31: #{discriminator_forward.1} parent=1 // pred_check_branch
      %47 = sbr.rel (0) target = $region33
    $region32: #{discriminator_forward.1} parent=1 // pred_region
      _
    $region33: #{discriminator_forward.1} parent=1 // pred_fallthru
      _
    // Predicated region
    $region34: #{discriminator_forward.1} parent=1 // pred_check
      _
    $region35: #{discriminator_forward.1} parent=1 // pred_check_branch
      %49 = sbr.rel (0) target = $region37
    $region36: #{discriminator_forward.1} parent=1 // pred_region
      _
    $region37: #{discriminator_forward.1} parent=1 // pred_fallthru
      _
    // Predicated region
    $region38: #{discriminator_forward.1} parent=1 // pred_check
      _
    $region39: #{discriminator_forward.1} parent=1 // pred_check_branch
      %51 = sbr.rel (0) target = $region41
    $region40: #{discriminator_forward.1} parent=1 // pred_region
      _
    $region41: #{discriminator_forward.1} parent=1 // pred_fallthru
      _
    // Predicated region
    $region42: #{discriminator_forward.1} parent=1 // pred_check
      _
    $region43: #{discriminator_forward.1} parent=1 // pred_check_branch
      %53 = sbr.rel (0) target = $region45
    $region44: #{discriminator_forward.1} parent=1 // pred_region
      _
    $region45: #{discriminator_forward.1} parent=1 // pred_fallthru
      _
    // Predicated region
    $region46: #{discriminator_forward.1} parent=1 // pred_check
      _
    $region47: #{discriminator_forward.1} parent=1 // pred_check_branch
      %55 = sbr.rel (0) target = $region49
    $region48: #{discriminator_forward.1} parent=1 // pred_region
      _
    $region49: #{discriminator_forward.1} parent=1 // pred_fallthru
      _
    // Predicated region
    $region50: #{discriminator_forward.1} parent=1 // pred_check
      _
    $region51: #{discriminator_forward.1} parent=1 // pred_check_branch
      %57 = sbr.rel (0) target = $region53
    $region52: #{discriminator_forward.1} parent=1 // pred_region
      _
    $region53: #{discriminator_forward.1} parent=1 // pred_fallthru
      _
    // Predicated region
    $region54: #{discriminator_forward.1} parent=1 // pred_check
      _
    $region55: #{discriminator_forward.1} parent=1 // pred_check_branch
      %59 = sbr.rel (0) target = $region57
    $region56: #{discriminator_forward.1} parent=1 // pred_region
      _
    $region57: #{discriminator_forward.1} parent=1 // pred_fallthru
      _
    // Predicated region
    $region58: #{discriminator_forward.1} parent=1 // pred_check
      _
    $region59: #{discriminator_forward.1} parent=1 // pred_check_branch
      %61 = sbr.rel (0) target = $region61
    $region60: #{discriminator_forward.1} parent=1 // pred_region
      %62 = dma.done [#allocation4], 32768
    $region61: #{discriminator_forward.1} parent=1 // pred_fallthru
      _
    %v63 = vld [vmem:[%s0] sm:$0xf]
    %v64 = vld [vmem:[#allocation3] sm:$0xff]
    %v65 = vld [vmem:[#allocation3 + $0x8] sm:$0xff]
    %v66 = vld [vmem:[#allocation3 + $0x10] sm:$0xff]
    %v67 = vld [vmem:[#allocation3 + $0x18] sm:$0xff]
    %v68 = vld [vmem:[#allocation3 + $0x20] sm:$0xff]
    %v69 = vld [vmem:[#allocation3 + $0x28] sm:$0xff]
    %v70 = vld [vmem:[#allocation3 + $0x30] sm:$0xff]
    %v71 = vld [vmem:[#allocation3 + $0x38] sm:$0xff]
    %v72 = vld [vmem:[#allocation3 + $0x40] sm:$0xff]
    %v73 = vld [vmem:[#allocation3 + $0x48] sm:$0xff]
    %v74 = vld [vmem:[#allocation3 + $0x50] sm:$0xff]
    %v75 = vld [vmem:[#allocation3 + $0x58] sm:$0xff]
    %v76 = vld [vmem:[#allocation3 + $0x60] sm:$0xff]
    %v77 = vld [vmem:[#allocation3 + $0x68] sm:$0xff]
    %v78 = vld [vmem:[#allocation3 + $0x70] sm:$0xff]
    %v79 = vld [vmem:[#allocation3 + $0x78] sm:$0xff]
    %v80 = vld [vmem:[#allocation3 + $0x80] sm:$0xff]
    %v81 = vld [vmem:[#allocation3 + $0x88] sm:$0xff]
    %v82 = vld [vmem:[#allocation3 + $0x90] sm:$0xff]
    %v83 = vld [vmem:[#allocation3 + $0x98] sm:$0xff]
    %v84 = vld [vmem:[#allocation3 + $0xa0] sm:$0xff]
    %v85 = vld [vmem:[#allocation3 + $0xa8] sm:$0xff]
    %v86 = vld [vmem:[#allocation3 + $0xb0] sm:$0xff]
    %v87 = vld [vmem:[#allocation3 + $0xb8] sm:$0xff]
    %v88 = vld [vmem:[#allocation3 + $0xc0] sm:$0xff]
    %v89 = vld [vmem:[#allocation3 + $0xc8] sm:$0xff]
    %v90 = vld [vmem:[#allocation3 + $0xd0] sm:$0xff]
    %v91 = vld [vmem:[#allocation3 + $0xd8] sm:$0xff]
    %v92 = vld [vmem:[#allocation3 + $0xe0] sm:$0xff]
    %v93 = vld [vmem:[#allocation3 + $0xe8] sm:$0xff]
    %v94 = vld [vmem:[#allocation3 + $0xf0] sm:$0xff]
    %v95 = vld [vmem:[#allocation3 + $0xf8] sm:$0xff]
    %v96 = vld [vmem:[#allocation3 + $0x100] sm:$0xff]
    %v97 = vld [vmem:[#allocation3 + $0x108] sm:$0xff]
    %v98 = vld [vmem:[#allocation3 + $0x110] sm:$0xff]
    %v99 = vld [vmem:[#allocation3 + $0x118] sm:$0xff]
    %v100 = vld [vmem:[#allocation3 + $0x120] sm:$0xff]
    %v101 = vld [vmem:[#allocation3 + $0x128] sm:$0xff]
    %v102 = vld [vmem:[#allocation3 + $0x130] sm:$0xff]
    %v103 = vld [vmem:[#allocation3 + $0x138] sm:$0xff]
    %v104 = vld [vmem:[#allocation3 + $0x140] sm:$0xff]
    %v105 = vld [vmem:[#allocation3 + $0x148] sm:$0xff]
    %v106 = vld [vmem:[#allocation3 + $0x150] sm:$0xff]
    %v107 = vld [vmem:[#allocation3 + $0x158] sm:$0xff]
    %v108 = vld [vmem:[#allocation3 + $0x160] sm:$0xff]
    %v109 = vld [vmem:[#allocation3 + $0x168] sm:$0xff]
    %v110 = vld [vmem:[#allocation3 + $0x170] sm:$0xff]
    %v111 = vld [vmem:[#allocation3 + $0x178] sm:$0xff]
    %v112 = vld [vmem:[#allocation3 + $0x180] sm:$0xff]
    %v113 = vld [vmem:[#allocation3 + $0x188] sm:$0xff]
    %v114 = vld [vmem:[#allocation3 + $0x190] sm:$0xff]
    %v115 = vld [vmem:[#allocation3 + $0x198] sm:$0xff]
    %v116 = vld [vmem:[#allocation3 + $0x1a0] sm:$0xff]
    %v117 = vld [vmem:[#allocation3 + $0x1a8] sm:$0xff]
    %v118 = vld [vmem:[#allocation3 + $0x1b0] sm:$0xff]
    %v119 = vld [vmem:[#allocation3 + $0x1b8] sm:$0xff]
    %v120 = vld [vmem:[#allocation3 + $0x1c0] sm:$0xff]
    %v121 = vld [vmem:[#allocation3 + $0x1c8] sm:$0xff]
    %v122 = vld [vmem:[#allocation3 + $0x1d0] sm:$0xff]
    %v123 = vld [vmem:[#allocation3 + $0x1d8] sm:$0xff]
    %v124 = vld [vmem:[#allocation3 + $0x1e0] sm:$0xff]
    %v125 = vld [vmem:[#allocation3 + $0x1e8] sm:$0xff]
    %v126 = vld [vmem:[#allocation3 + $0x1f0] sm:$0xff]
    %v127 = vld [vmem:[#allocation3 + $0x1f8] sm:$0xff]
    %v130 = vunpack.c.l.s4 1983009808
    %v131 = vunpack.c.0.s8 %v130
    %v132 = vlaneseq
    %v133 = vshrl.u32 %v132, 7
    %v134 = vsub.s32 %v131, %v133
    %v135 = vrot.slane %v63, %v134
    %v136 = vcombine.high %v135, %v135
    %v139 = vpack.c.bf16 %v135, %v135
    %v140 = vpack.c.bf16 %v136, %v136
    %v141 = vld [vmem:[%s3] sm:$0xf]
    %v143 = vlaneseq
    %v144 = vshrl.u32 %v143, 7
    %v145 = vsub.s32 0, %v144
    %v146 = vrot.slane %v141, %v145
    %v147 = vlaneseq
    %v148 = vshrl.u32 %v147, 7
    %v149 = vsub.s32 1, %v148
    %v150 = vrot.slane %v141, %v149
    %v151 = vlaneseq
    %v152 = vshrl.u32 %v151, 7
    %v153 = vsub.s32 2, %v152
    %v154 = vrot.slane %v141, %v153
    %v155 = vlaneseq
    %v156 = vshrl.u32 %v155, 7
    %v157 = vsub.s32 3, %v156
    %v158 = vrot.slane %v141, %v157
    %v227 = vunpack.c.l.b16 %v64
    %v228 = vunpack.c.h.b16 %v64
    %v229 = vunpack.c.l.b16 %v65
    %v230 = vunpack.c.h.b16 %v65
    %v231 = vunpack.c.l.b16 %v66
    %v232 = vunpack.c.h.b16 %v66
    %v233 = vunpack.c.l.b16 %v67
    %v234 = vunpack.c.h.b16 %v67
    %v235 = vunpack.c.l.b16 %v68
    %v236 = vunpack.c.h.b16 %v68
    %v237 = vunpack.c.l.b16 %v69
    %v238 = vunpack.c.h.b16 %v69
    %v239 = vunpack.c.l.b16 %v70
    %v240 = vunpack.c.h.b16 %v70
    %v241 = vunpack.c.l.b16 %v71
    %v242 = vunpack.c.h.b16 %v71
    %v243 = vunpack.c.l.b16 %v72
    %v244 = vunpack.c.h.b16 %v72
    %v245 = vunpack.c.l.b16 %v73
    %v246 = vunpack.c.h.b16 %v73
    %v247 = vunpack.c.l.b16 %v74
    %v248 = vunpack.c.h.b16 %v74
    %v249 = vunpack.c.l.b16 %v75
    %v250 = vunpack.c.h.b16 %v75
    %v251 = vunpack.c.l.b16 %v76
    %v252 = vunpack.c.h.b16 %v76
    %v253 = vunpack.c.l.b16 %v77
    %v254 = vunpack.c.h.b16 %v77
    %v255 = vunpack.c.l.b16 %v78
    %v256 = vunpack.c.h.b16 %v78
    %v257 = vunpack.c.l.b16 %v79
    %v258 = vunpack.c.h.b16 %v79
    %v259 = vunpack.c.l.b16 %v80
    %v260 = vunpack.c.h.b16 %v80
    %v261 = vunpack.c.l.b16 %v81
    %v262 = vunpack.c.h.b16 %v81
    %v263 = vunpack.c.l.b16 %v82
    %v264 = vunpack.c.h.b16 %v82
    %v265 = vunpack.c.l.b16 %v83
    %v266 = vunpack.c.h.b16 %v83
    %v267 = vunpack.c.l.b16 %v84
    %v268 = vunpack.c.h.b16 %v84
    %v269 = vunpack.c.l.b16 %v85
    %v270 = vunpack.c.h.b16 %v85
    %v271 = vunpack.c.l.b16 %v86
    %v272 = vunpack.c.h.b16 %v86
    %v273 = vunpack.c.l.b16 %v87
    %v274 = vunpack.c.h.b16 %v87
    %v275 = vunpack.c.l.b16 %v88
    %v276 = vunpack.c.h.b16 %v88
    %v277 = vunpack.c.l.b16 %v89
    %v278 = vunpack.c.h.b16 %v89
    %v279 = vunpack.c.l.b16 %v90
    %v280 = vunpack.c.h.b16 %v90
    %v281 = vunpack.c.l.b16 %v91
    %v282 = vunpack.c.h.b16 %v91
    %v283 = vunpack.c.l.b16 %v92
    %v284 = vunpack.c.h.b16 %v92
    %v285 = vunpack.c.l.b16 %v93
    %v286 = vunpack.c.h.b16 %v93
    %v287 = vunpack.c.l.b16 %v94
    %v288 = vunpack.c.h.b16 %v94
    %v289 = vunpack.c.l.b16 %v95
    %v290 = vunpack.c.h.b16 %v95
    %v291 = vunpack.c.l.b16 %v96
    %v292 = vunpack.c.h.b16 %v96
    %v293 = vunpack.c.l.b16 %v97
    %v294 = vunpack.c.h.b16 %v97
    %v295 = vunpack.c.l.b16 %v98
    %v296 = vunpack.c.h.b16 %v98
    %v297 = vunpack.c.l.b16 %v99
    %v298 = vunpack.c.h.b16 %v99
    %v299 = vunpack.c.l.b16 %v100
    %v300 = vunpack.c.h.b16 %v100
    %v301 = vunpack.c.l.b16 %v101
    %v302 = vunpack.c.h.b16 %v101
    %v303 = vunpack.c.l.b16 %v102
    %v304 = vunpack.c.h.b16 %v102
    %v305 = vunpack.c.l.b16 %v103
    %v306 = vunpack.c.h.b16 %v103
    %v307 = vunpack.c.l.b16 %v104
    %v308 = vunpack.c.h.b16 %v104
    %v309 = vunpack.c.l.b16 %v105
    %v310 = vunpack.c.h.b16 %v105
    %v311 = vunpack.c.l.b16 %v106
    %v312 = vunpack.c.h.b16 %v106
    %v313 = vunpack.c.l.b16 %v107
    %v314 = vunpack.c.h.b16 %v107
    %v315 = vunpack.c.l.b16 %v108
    %v316 = vunpack.c.h.b16 %v108
    %v317 = vunpack.c.l.b16 %v109
    %v318 = vunpack.c.h.b16 %v109
    %v319 = vunpack.c.l.b16 %v110
    %v320 = vunpack.c.h.b16 %v110
    %v321 = vunpack.c.l.b16 %v111
    %v322 = vunpack.c.h.b16 %v111
    %v323 = vunpack.c.l.b16 %v112
    %v324 = vunpack.c.h.b16 %v112
    %v325 = vunpack.c.l.b16 %v113
    %v326 = vunpack.c.h.b16 %v113
    %v327 = vunpack.c.l.b16 %v114
    %v328 = vunpack.c.h.b16 %v114
    %v329 = vunpack.c.l.b16 %v115
    %v330 = vunpack.c.h.b16 %v115
    %v331 = vunpack.c.l.b16 %v116
    %v332 = vunpack.c.h.b16 %v116
    %v333 = vunpack.c.l.b16 %v117
    %v334 = vunpack.c.h.b16 %v117
    %v335 = vunpack.c.l.b16 %v118
    %v336 = vunpack.c.h.b16 %v118
    %v337 = vunpack.c.l.b16 %v119
    %v338 = vunpack.c.h.b16 %v119
    %v339 = vunpack.c.l.b16 %v120
    %v340 = vunpack.c.h.b16 %v120
    %v341 = vunpack.c.l.b16 %v121
    %v342 = vunpack.c.h.b16 %v121
    %v343 = vunpack.c.l.b16 %v122
    %v344 = vunpack.c.h.b16 %v122
    %v345 = vunpack.c.l.b16 %v123
    %v346 = vunpack.c.h.b16 %v123
    %v347 = vunpack.c.l.b16 %v124
    %v348 = vunpack.c.h.b16 %v124
    %v349 = vunpack.c.l.b16 %v125
    %v350 = vunpack.c.h.b16 %v125
    %v351 = vunpack.c.l.b16 %v126
    %v352 = vunpack.c.h.b16 %v126
    %v353 = vunpack.c.l.b16 %v127
    %v354 = vunpack.c.h.b16 %v127
    %v355 = vpack.c.b16 %v231, %v227
    %v356 = vpack.c.b16 %v232, %v228
    %v357 = vpack.c.b16 %v233, %v229
    %v358 = vpack.c.b16 %v234, %v230
    %v359 = vpack.c.b16 %v239, %v235
    %v360 = vpack.c.b16 %v240, %v236
    %v361 = vpack.c.b16 %v241, %v237
    %v362 = vpack.c.b16 %v242, %v238
    %v363 = vpack.c.b16 %v247, %v243
    %v364 = vpack.c.b16 %v248, %v244
    %v365 = vpack.c.b16 %v249, %v245
    %v366 = vpack.c.b16 %v250, %v246
    %v367 = vpack.c.b16 %v255, %v251
    %v368 = vpack.c.b16 %v256, %v252
    %v369 = vpack.c.b16 %v257, %v253
    %v370 = vpack.c.b16 %v258, %v254
    %v371 = vpack.c.b16 %v263, %v259
    %v372 = vpack.c.b16 %v264, %v260
    %v373 = vpack.c.b16 %v265, %v261
    %v374 = vpack.c.b16 %v266, %v262
    %v375 = vpack.c.b16 %v271, %v267
    %v376 = vpack.c.b16 %v272, %v268
    %v377 = vpack.c.b16 %v273, %v269
    %v378 = vpack.c.b16 %v274, %v270
    %v379 = vpack.c.b16 %v279, %v275
    %v380 = vpack.c.b16 %v280, %v276
    %v381 = vpack.c.b16 %v281, %v277
    %v382 = vpack.c.b16 %v282, %v278
    %v383 = vpack.c.b16 %v287, %v283
    %v384 = vpack.c.b16 %v288, %v284
    %v385 = vpack.c.b16 %v289, %v285
    %v386 = vpack.c.b16 %v290, %v286
    %v387 = vpack.c.b16 %v295, %v291
    %v388 = vpack.c.b16 %v296, %v292
    %v389 = vpack.c.b16 %v297, %v293
    %v390 = vpack.c.b16 %v298, %v294
    %v391 = vpack.c.b16 %v303, %v299
    %v392 = vpack.c.b16 %v304, %v300
    %v393 = vpack.c.b16 %v305, %v301
    %v394 = vpack.c.b16 %v306, %v302
    %v395 = vpack.c.b16 %v311, %v307
    %v396 = vpack.c.b16 %v312, %v308
    %v397 = vpack.c.b16 %v313, %v309
    %v398 = vpack.c.b16 %v314, %v310
    %v399 = vpack.c.b16 %v319, %v315
    %v400 = vpack.c.b16 %v320, %v316
    %v401 = vpack.c.b16 %v321, %v317
    %v402 = vpack.c.b16 %v322, %v318
    %v403 = vpack.c.b16 %v327, %v323
    %v404 = vpack.c.b16 %v328, %v324
    %v405 = vpack.c.b16 %v329, %v325
    %v406 = vpack.c.b16 %v330, %v326
    %v407 = vpack.c.b16 %v335, %v331
    %v408 = vpack.c.b16 %v336, %v332
    %v409 = vpack.c.b16 %v337, %v333
    %v410 = vpack.c.b16 %v338, %v334
    %v411 = vpack.c.b16 %v343, %v339
    %v412 = vpack.c.b16 %v344, %v340
    %v413 = vpack.c.b16 %v345, %v341
    %v414 = vpack.c.b16 %v346, %v342
    %v415 = vpack.c.b16 %v351, %v347
    %v416 = vpack.c.b16 %v352, %v348
    %v417 = vpack.c.b16 %v353, %v349
    %v418 = vpack.c.b16 %v354, %v350
    %483 = vmatprep.subr.bf16.mxu0 %v356
    %484 = vmatpush1.bf16.msra.mxu0 %v355
    %485 = vmatprep.subr.bf16.mxu0 %v360
    %486 = vmatpush1.bf16.msra.mxu0 %v359
    %487 = vmatprep.subr.bf16.mxu0 %v364
    %488 = vmatpush1.bf16.msra.mxu0 %v363
    %489 = vmatprep.subr.bf16.mxu0 %v368
    %490 = vmatpush1.bf16.msra.mxu0 %v367
    %491 = vmatprep.subr.bf16.mxu0 %v372
    %492 = vmatpush1.bf16.msra.mxu0 %v371
    %493 = vmatprep.subr.bf16.mxu0 %v376
    %494 = vmatpush1.bf16.msra.mxu0 %v375
    %495 = vmatprep.subr.bf16.mxu0 %v380
    %496 = vmatpush1.bf16.msra.mxu0 %v379
    %497 = vmatprep.subr.bf16.mxu0 %v384
    %498 = vmatpush1.bf16.msra.mxu0 %v383
    %499 = vmatprep.subr.bf16.mxu0 %v388
    %500 = vmatpush1.bf16.msra.mxu0 %v387
    %501 = vmatprep.subr.bf16.mxu0 %v392
    %502 = vmatpush1.bf16.msra.mxu0 %v391
    %503 = vmatprep.subr.bf16.mxu0 %v396
    %504 = vmatpush1.bf16.msra.mxu0 %v395
    %505 = vmatprep.subr.bf16.mxu0 %v400
    %506 = vmatpush1.bf16.msra.mxu0 %v399
    %507 = vmatprep.subr.bf16.mxu0 %v404
    %508 = vmatpush1.bf16.msra.mxu0 %v403
    %509 = vmatprep.subr.bf16.mxu0 %v408
    %510 = vmatpush1.bf16.msra.mxu0 %v407
    %511 = vmatprep.subr.bf16.mxu0 %v412
    %512 = vmatpush1.bf16.msra.mxu0 %v411
    %513 = vmatprep.subr.bf16.mxu0 %v416
    %514 = vmatpush1.bf16.msra.mxu0 %v415
    %515 = vmatprep.mubr.bf16.mxu0 %v140
    %516 = vmatmul.mubr.bf16.gmra.mrb[0].mxu0 %v139
    %v517 = vpop.f32.mrb[0].mxu0
    %v518 = vadd.f32 %v146, %v517
    %v519 = vpop.f32.mrb[0].mxu0
    %v520 = vadd.f32 %v150, %v519
    %v521 = vpop.f32.mrb[0].mxu0
    %v522 = vpop.f32.mrb[0].mxu0
    %523 = vdwg.mxu0
    %524 = vmatprep.subr.bf16.mxu0 %v358
    %525 = vmatpush1.bf16.msra.mxu0 %v357
    %526 = vmatprep.subr.bf16.mxu0 %v362
    %527 = vmatpush1.bf16.msra.mxu0 %v361
    %528 = vmatprep.subr.bf16.mxu0 %v366
    %529 = vmatpush1.bf16.msra.mxu0 %v365
    %530 = vmatprep.subr.bf16.mxu0 %v370
    %531 = vmatpush1.bf16.msra.mxu0 %v369
    %532 = vmatprep.subr.bf16.mxu0 %v374
    %533 = vmatpush1.bf16.msra.mxu0 %v373
    %534 = vmatprep.subr.bf16.mxu0 %v378
    %535 = vmatpush1.bf16.msra.mxu0 %v377
    %536 = vmatprep.subr.bf16.mxu0 %v382
    %537 = vmatpush1.bf16.msra.mxu0 %v381
    %538 = vmatprep.subr.bf16.mxu0 %v386
    %539 = vmatpush1.bf16.msra.mxu0 %v385
    %540 = vmatprep.subr.bf16.mxu0 %v390
    %541 = vmatpush1.bf16.msra.mxu0 %v389
    %542 = vmatprep.subr.bf16.mxu0 %v394
    %543 = vmatpush1.bf16.msra.mxu0 %v393
    %544 = vmatprep.subr.bf16.mxu0 %v398
    %545 = vmatpush1.bf16.msra.mxu0 %v397
    %546 = vmatprep.subr.bf16.mxu0 %v402
    %547 = vmatpush1.bf16.msra.mxu0 %v401
    %548 = vmatprep.subr.bf16.mxu0 %v406
    %549 = vmatpush1.bf16.msra.mxu0 %v405
    %550 = vmatprep.subr.bf16.mxu0 %v410
    %551 = vmatpush1.bf16.msra.mxu0 %v409
    %552 = vmatprep.subr.bf16.mxu0 %v414
    %553 = vmatpush1.bf16.msra.mxu0 %v413
    %554 = vmatprep.subr.bf16.mxu0 %v418
    %555 = vmatpush1.bf16.msra.mxu0 %v417
    %556 = vmatprep.mubr.bf16.mxu0 %v140
    %557 = vmatmul.mubr.bf16.gmra.mrb[0].mxu0 %v139
    %v558 = vpop.f32.mrb[0].mxu0
    %v559 = vadd.f32 %v154, %v558
    %v560 = vpop.f32.mrb[0].mxu0
    %v561 = vadd.f32 %v158, %v560
    %v562 = vpop.f32.mrb[0].mxu0
    %v563 = vpop.f32.mrb[0].mxu0
    %564 = vdwg.mxu0
    %vm565 = vcmp.gt.f32.partialorder %v518, 0.0
    %vm566 = vcmp.gt.f32.partialorder %v520, 0.0
    %vm567 = vcmp.gt.f32.partialorder %v559, 0.0
    %vm568 = vcmp.gt.f32.partialorder %v561, 0.0
    %v569 = vmin.f32 %v518, 0.0
    %v570 = vmin.f32 %v520, 0.0
    %v571 = vmin.f32 %v559, 0.0
    %v572 = vmin.f32 %v561, 0.0
    %v573 = vmul.f32 %v569, 1.442695
    %v574 = vpow.pop %v573
    %v575 = vmul.f32 %v570, 1.442695
    %v576 = vpow.pop %v575
    %v577 = vmul.f32 %v571, 1.442695
    %v578 = vpow.pop %v577
    %v579 = vmul.f32 %v572, 1.442695
    %v580 = vpow.pop %v579
    %v581 = vsub.f32 %v574, 1.0
    %v582 = vsub.f32 %v576, 1.0
    %v583 = vsub.f32 %v578, 1.0
    %v584 = vsub.f32 %v580, 1.0
    %v585 = vmul.f32 %v581, 2.0
    %v586 = vmul.f32 %v582, 2.0
    %v587 = vmul.f32 %v583, 2.0
    %v588 = vmul.f32 %v584, 2.0
    %v589 = vsel %vm565, %v518, %v585
    %v590 = vsel %vm566, %v520, %v586
    %v591 = vsel %vm567, %v559, %v587
    %v592 = vsel %vm568, %v561, %v588
    %v593 = vadd.f32 %v589, %v591
    %v594 = vadd.f32 %v590, %v592
    %s595 = scalar_lea.vmem [#allocation3], 512
    %v596 = vld [vmem:[%s595] sm:$0xff]
    %v597 = vld [vmem:[%s595 + $0x8] sm:$0xff]
    %v598 = vld [vmem:[%s595 + $0x10] sm:$0xff]
    %v599 = vld [vmem:[%s595 + $0x18] sm:$0xff]
    %v600 = vld [vmem:[%s595 + $0x20] sm:$0xff]
    %v601 = vld [vmem:[%s595 + $0x28] sm:$0xff]
    %v602 = vld [vmem:[%s595 + $0x30] sm:$0xff]
    %v603 = vld [vmem:[%s595 + $0x38] sm:$0xff]
    %v604 = vld [vmem:[%s595 + $0x40] sm:$0xff]
    %v605 = vld [vmem:[%s595 + $0x48] sm:$0xff]
    %v606 = vld [vmem:[%s595 + $0x50] sm:$0xff]
    %v607 = vld [vmem:[%s595 + $0x58] sm:$0xff]
    %v608 = vld [vmem:[%s595 + $0x60] sm:$0xff]
    %v609 = vld [vmem:[%s595 + $0x68] sm:$0xff]
    %v610 = vld [vmem:[%s595 + $0x70] sm:$0xff]
    %v611 = vld [vmem:[%s595 + $0x78] sm:$0xff]
    %v612 = vld [vmem:[%s595 + $0x80] sm:$0xff]
    %v613 = vld [vmem:[%s595 + $0x88] sm:$0xff]
    %v614 = vld [vmem:[%s595 + $0x90] sm:$0xff]
    %v615 = vld [vmem:[%s595 + $0x98] sm:$0xff]
    %v616 = vld [vmem:[%s595 + $0xa0] sm:$0xff]
    %v617 = vld [vmem:[%s595 + $0xa8] sm:$0xff]
    %v618 = vld [vmem:[%s595 + $0xb0] sm:$0xff]
    %v619 = vld [vmem:[%s595 + $0xb8] sm:$0xff]
    %v620 = vld [vmem:[%s595 + $0xc0] sm:$0xff]
    %v621 = vld [vmem:[%s595 + $0xc8] sm:$0xff]
    %v622 = vld [vmem:[%s595 + $0xd0] sm:$0xff]
    %v623 = vld [vmem:[%s595 + $0xd8] sm:$0xff]
    %v624 = vld [vmem:[%s595 + $0xe0] sm:$0xff]
    %v625 = vld [vmem:[%s595 + $0xe8] sm:$0xff]
    %v626 = vld [vmem:[%s595 + $0xf0] sm:$0xff]
    %v627 = vld [vmem:[%s595 + $0xf8] sm:$0xff]
    %v628 = vld [vmem:[%s595 + $0x100] sm:$0xff]
    %v629 = vld [vmem:[%s595 + $0x108] sm:$0xff]
    %v630 = vld [vmem:[%s595 + $0x110] sm:$0xff]
    %v631 = vld [vmem:[%s595 + $0x118] sm:$0xff]
    %v632 = vld [vmem:[%s595 + $0x120] sm:$0xff]
    %v633 = vld [vmem:[%s595 + $0x128] sm:$0xff]
    %v634 = vld [vmem:[%s595 + $0x130] sm:$0xff]
    %v635 = vld [vmem:[%s595 + $0x138] sm:$0xff]
    %v636 = vld [vmem:[%s595 + $0x140] sm:$0xff]
    %v637 = vld [vmem:[%s595 + $0x148] sm:$0xff]
    %v638 = vld [vmem:[%s595 + $0x150] sm:$0xff]
    %v639 = vld [vmem:[%s595 + $0x158] sm:$0xff]
    %v640 = vld [vmem:[%s595 + $0x160] sm:$0xff]
    %v641 = vld [vmem:[%s595 + $0x168] sm:$0xff]
    %v642 = vld [vmem:[%s595 + $0x170] sm:$0xff]
    %v643 = vld [vmem:[%s595 + $0x178] sm:$0xff]
    %v644 = vld [vmem:[%s595 + $0x180] sm:$0xff]
    %v645 = vld [vmem:[%s595 + $0x188] sm:$0xff]
    %v646 = vld [vmem:[%s595 + $0x190] sm:$0xff]
    %v647 = vld [vmem:[%s595 + $0x198] sm:$0xff]
    %v648 = vld [vmem:[%s595 + $0x1a0] sm:$0xff]
    %v649 = vld [vmem:[%s595 + $0x1a8] sm:$0xff]
    %v650 = vld [vmem:[%s595 + $0x1b0] sm:$0xff]
    %v651 = vld [vmem:[%s595 + $0x1b8] sm:$0xff]
    %v652 = vld [vmem:[%s595 + $0x1c0] sm:$0xff]
    %v653 = vld [vmem:[%s595 + $0x1c8] sm:$0xff]
    %v654 = vld [vmem:[%s595 + $0x1d0] sm:$0xff]
    %v655 = vld [vmem:[%s595 + $0x1d8] sm:$0xff]
    %v656 = vld [vmem:[%s595 + $0x1e0] sm:$0xff]
    %v657 = vld [vmem:[%s595 + $0x1e8] sm:$0xff]
    %v658 = vld [vmem:[%s595 + $0x1f0] sm:$0xff]
    %v659 = vld [vmem:[%s595 + $0x1f8] sm:$0xff]
    %v660 = vpack.c.bf16 %v593, %v593
    %v661 = vpack.c.bf16 %v594, %v594
    %s662 = scalar_lea.vmem %s3, 4
    %v663 = vld [vmem:[%s662] sm:$0xf]
    %v665 = vlaneseq
    %v666 = vshrl.u32 %v665, 7
    %v667 = vsub.s32 0, %v666
    %v668 = vrot.slane %v663, %v667
    %v669 = vlaneseq
    %v670 = vshrl.u32 %v669, 7
    %v671 = vsub.s32 1, %v670
    %v672 = vrot.slane %v663, %v671
    %v673 = vlaneseq
    %v674 = vshrl.u32 %v673, 7
    %v675 = vsub.s32 2, %v674
    %v676 = vrot.slane %v663, %v675
    %v677 = vlaneseq
    %v678 = vshrl.u32 %v677, 7
    %v679 = vsub.s32 3, %v678
    %v680 = vrot.slane %v663, %v679
    %v749 = vunpack.c.l.b16 %v596
    %v750 = vunpack.c.h.b16 %v596
    %v751 = vunpack.c.l.b16 %v597
    %v752 = vunpack.c.h.b16 %v597
    %v753 = vunpack.c.l.b16 %v598
    %v754 = vunpack.c.h.b16 %v598
    %v755 = vunpack.c.l.b16 %v599
    %v756 = vunpack.c.h.b16 %v599
    %v757 = vunpack.c.l.b16 %v600
    %v758 = vunpack.c.h.b16 %v600
    %v759 = vunpack.c.l.b16 %v601
    %v760 = vunpack.c.h.b16 %v601
    %v761 = vunpack.c.l.b16 %v602
    %v762 = vunpack.c.h.b16 %v602
    %v763 = vunpack.c.l.b16 %v603
    %v764 = vunpack.c.h.b16 %v603
    %v765 = vunpack.c.l.b16 %v604
    %v766 = vunpack.c.h.b16 %v604
    %v767 = vunpack.c.l.b16 %v605
    %v768 = vunpack.c.h.b16 %v605
    %v769 = vunpack.c.l.b16 %v606
    %v770 = vunpack.c.h.b16 %v606
    %v771 = vunpack.c.l.b16 %v607
    %v772 = vunpack.c.h.b16 %v607
    %v773 = vunpack.c.l.b16 %v608
    %v774 = vunpack.c.h.b16 %v608
    %v775 = vunpack.c.l.b16 %v609
    %v776 = vunpack.c.h.b16 %v609
    %v777 = vunpack.c.l.b16 %v610
    %v778 = vunpack.c.h.b16 %v610
    %v779 = vunpack.c.l.b16 %v611
    %v780 = vunpack.c.h.b16 %v611
    %v781 = vunpack.c.l.b16 %v612
    %v782 = vunpack.c.h.b16 %v612
    %v783 = vunpack.c.l.b16 %v613
    %v784 = vunpack.c.h.b16 %v613
    %v785 = vunpack.c.l.b16 %v614
    %v786 = vunpack.c.h.b16 %v614
    %v787 = vunpack.c.l.b16 %v615
    %v788 = vunpack.c.h.b16 %v615
    %v789 = vunpack.c.l.b16 %v616
    %v790 = vunpack.c.h.b16 %v616
    %v791 = vunpack.c.l.b16 %v617
    %v792 = vunpack.c.h.b16 %v617
    %v793 = vunpack.c.l.b16 %v618
    %v794 = vunpack.c.h.b16 %v618
    %v795 = vunpack.c.l.b16 %v619
    %v796 = vunpack.c.h.b16 %v619
    %v797 = vunpack.c.l.b16 %v620
    %v798 = vunpack.c.h.b16 %v620
    %v799 = vunpack.c.l.b16 %v621
    %v800 = vunpack.c.h.b16 %v621
    %v801 = vunpack.c.l.b16 %v622
    %v802 = vunpack.c.h.b16 %v622
    %v803 = vunpack.c.l.b16 %v623
    %v804 = vunpack.c.h.b16 %v623
    %v805 = vunpack.c.l.b16 %v624
    %v806 = vunpack.c.h.b16 %v624
    %v807 = vunpack.c.l.b16 %v625
    %v808 = vunpack.c.h.b16 %v625
    %v809 = vunpack.c.l.b16 %v626
    %v810 = vunpack.c.h.b16 %v626
    %v811 = vunpack.c.l.b16 %v627
    %v812 = vunpack.c.h.b16 %v627
    %v813 = vunpack.c.l.b16 %v628
    %v814 = vunpack.c.h.b16 %v628
    %v815 = vunpack.c.l.b16 %v629
    %v816 = vunpack.c.h.b16 %v629
    %v817 = vunpack.c.l.b16 %v630
    %v818 = vunpack.c.h.b16 %v630
    %v819 = vunpack.c.l.b16 %v631
    %v820 = vunpack.c.h.b16 %v631
    %v821 = vunpack.c.l.b16 %v632
    %v822 = vunpack.c.h.b16 %v632
    %v823 = vunpack.c.l.b16 %v633
    %v824 = vunpack.c.h.b16 %v633
    %v825 = vunpack.c.l.b16 %v634
    %v826 = vunpack.c.h.b16 %v634
    %v827 = vunpack.c.l.b16 %v635
    %v828 = vunpack.c.h.b16 %v635
    %v829 = vunpack.c.l.b16 %v636
    %v830 = vunpack.c.h.b16 %v636
    %v831 = vunpack.c.l.b16 %v637
    %v832 = vunpack.c.h.b16 %v637
    %v833 = vunpack.c.l.b16 %v638
    %v834 = vunpack.c.h.b16 %v638
    %v835 = vunpack.c.l.b16 %v639
    %v836 = vunpack.c.h.b16 %v639
    %v837 = vunpack.c.l.b16 %v640
    %v838 = vunpack.c.h.b16 %v640
    %v839 = vunpack.c.l.b16 %v641
    %v840 = vunpack.c.h.b16 %v641
    %v841 = vunpack.c.l.b16 %v642
    %v842 = vunpack.c.h.b16 %v642
    %v843 = vunpack.c.l.b16 %v643
    %v844 = vunpack.c.h.b16 %v643
    %v845 = vunpack.c.l.b16 %v644
    %v846 = vunpack.c.h.b16 %v644
    %v847 = vunpack.c.l.b16 %v645
    %v848 = vunpack.c.h.b16 %v645
    %v849 = vunpack.c.l.b16 %v646
    %v850 = vunpack.c.h.b16 %v646
    %v851 = vunpack.c.l.b16 %v647
    %v852 = vunpack.c.h.b16 %v647
    %v853 = vunpack.c.l.b16 %v648
    %v854 = vunpack.c.h.b16 %v648
    %v855 = vunpack.c.l.b16 %v649
    %v856 = vunpack.c.h.b16 %v649
    %v857 = vunpack.c.l.b16 %v650
    %v858 = vunpack.c.h.b16 %v650
    %v859 = vunpack.c.l.b16 %v651
    %v860 = vunpack.c.h.b16 %v651
    %v861 = vunpack.c.l.b16 %v652
    %v862 = vunpack.c.h.b16 %v652
    %v863 = vunpack.c.l.b16 %v653
    %v864 = vunpack.c.h.b16 %v653
    %v865 = vunpack.c.l.b16 %v654
    %v866 = vunpack.c.h.b16 %v654
    %v867 = vunpack.c.l.b16 %v655
    %v868 = vunpack.c.h.b16 %v655
    %v869 = vunpack.c.l.b16 %v656
    %v870 = vunpack.c.h.b16 %v656
    %v871 = vunpack.c.l.b16 %v657
    %v872 = vunpack.c.h.b16 %v657
    %v873 = vunpack.c.l.b16 %v658
    %v874 = vunpack.c.h.b16 %v658
    %v875 = vunpack.c.l.b16 %v659
    %v876 = vunpack.c.h.b16 %v659
    %v877 = vpack.c.b16 %v753, %v749
    %v878 = vpack.c.b16 %v754, %v750
    %v879 = vpack.c.b16 %v755, %v751
    %v880 = vpack.c.b16 %v756, %v752
    %v881 = vpack.c.b16 %v761, %v757
    %v882 = vpack.c.b16 %v762, %v758
    %v883 = vpack.c.b16 %v763, %v759
    %v884 = vpack.c.b16 %v764, %v760
    %v885 = vpack.c.b16 %v769, %v765
    %v886 = vpack.c.b16 %v770, %v766
    %v887 = vpack.c.b16 %v771, %v767
    %v888 = vpack.c.b16 %v772, %v768
    %v889 = vpack.c.b16 %v777, %v773
    %v890 = vpack.c.b16 %v778, %v774
    %v891 = vpack.c.b16 %v779, %v775
    %v892 = vpack.c.b16 %v780, %v776
    %v893 = vpack.c.b16 %v785, %v781
    %v894 = vpack.c.b16 %v786, %v782
    %v895 = vpack.c.b16 %v787, %v783
    %v896 = vpack.c.b16 %v788, %v784
    %v897 = vpack.c.b16 %v793, %v789
    %v898 = vpack.c.b16 %v794, %v790
    %v899 = vpack.c.b16 %v795, %v791
    %v900 = vpack.c.b16 %v796, %v792
    %v901 = vpack.c.b16 %v801, %v797
    %v902 = vpack.c.b16 %v802, %v798
    %v903 = vpack.c.b16 %v803, %v799
    %v904 = vpack.c.b16 %v804, %v800
    %v905 = vpack.c.b16 %v809, %v805
    %v906 = vpack.c.b16 %v810, %v806
    %v907 = vpack.c.b16 %v811, %v807
    %v908 = vpack.c.b16 %v812, %v808
    %v909 = vpack.c.b16 %v817, %v813
    %v910 = vpack.c.b16 %v818, %v814
    %v911 = vpack.c.b16 %v819, %v815
    %v912 = vpack.c.b16 %v820, %v816
    %v913 = vpack.c.b16 %v825, %v821
    %v914 = vpack.c.b16 %v826, %v822
    %v915 = vpack.c.b16 %v827, %v823
    %v916 = vpack.c.b16 %v828, %v824
    %v917 = vpack.c.b16 %v833, %v829
    %v918 = vpack.c.b16 %v834, %v830
    %v919 = vpack.c.b16 %v835, %v831
    %v920 = vpack.c.b16 %v836, %v832
    %v921 = vpack.c.b16 %v841, %v837
    %v922 = vpack.c.b16 %v842, %v838
    %v923 = vpack.c.b16 %v843, %v839
    %v924 = vpack.c.b16 %v844, %v840
    %v925 = vpack.c.b16 %v849, %v845
    %v926 = vpack.c.b16 %v850, %v846
    %v927 = vpack.c.b16 %v851, %v847
    %v928 = vpack.c.b16 %v852, %v848
    %v929 = vpack.c.b16 %v857, %v853
    %v930 = vpack.c.b16 %v858, %v854
    %v931 = vpack.c.b16 %v859, %v855
    %v932 = vpack.c.b16 %v860, %v856
    %v933 = vpack.c.b16 %v865, %v861
    %v934 = vpack.c.b16 %v866, %v862
    %v935 = vpack.c.b16 %v867, %v863
    %v936 = vpack.c.b16 %v868, %v864
    %v937 = vpack.c.b16 %v873, %v869
    %v938 = vpack.c.b16 %v874, %v870
    %v939 = vpack.c.b16 %v875, %v871
    %v940 = vpack.c.b16 %v876, %v872
    %1005 = vmatprep.subr.bf16.mxu0 %v878
    %1006 = vmatpush1.bf16.msra.mxu0 %v877
    %1007 = vmatprep.subr.bf16.mxu0 %v882
    %1008 = vmatpush1.bf16.msra.mxu0 %v881
    %1009 = vmatprep.subr.bf16.mxu0 %v886
    %1010 = vmatpush1.bf16.msra.mxu0 %v885
    %1011 = vmatprep.subr.bf16.mxu0 %v890
    %1012 = vmatpush1.bf16.msra.mxu0 %v889
    %1013 = vmatprep.subr.bf16.mxu0 %v894
    %1014 = vmatpush1.bf16.msra.mxu0 %v893
    %1015 = vmatprep.subr.bf16.mxu0 %v898
    %1016 = vmatpush1.bf16.msra.mxu0 %v897
    %1017 = vmatprep.subr.bf16.mxu0 %v902
    %1018 = vmatpush1.bf16.msra.mxu0 %v901
    %1019 = vmatprep.subr.bf16.mxu0 %v906
    %1020 = vmatpush1.bf16.msra.mxu0 %v905
    %1021 = vmatprep.subr.bf16.mxu0 %v910
    %1022 = vmatpush1.bf16.msra.mxu0 %v909
    %1023 = vmatprep.subr.bf16.mxu0 %v914
    %1024 = vmatpush1.bf16.msra.mxu0 %v913
    %1025 = vmatprep.subr.bf16.mxu0 %v918
    %1026 = vmatpush1.bf16.msra.mxu0 %v917
    %1027 = vmatprep.subr.bf16.mxu0 %v922
    %1028 = vmatpush1.bf16.msra.mxu0 %v921
    %1029 = vmatprep.subr.bf16.mxu0 %v926
    %1030 = vmatpush1.bf16.msra.mxu0 %v925
    %1031 = vmatprep.subr.bf16.mxu0 %v930
    %1032 = vmatpush1.bf16.msra.mxu0 %v929
    %1033 = vmatprep.subr.bf16.mxu0 %v934
    %1034 = vmatpush1.bf16.msra.mxu0 %v933
    %1035 = vmatprep.subr.bf16.mxu0 %v938
    %1036 = vmatpush1.bf16.msra.mxu0 %v937
    %1037 = vmatprep.mubr.bf16.mxu0 %v661
    %1038 = vmatmul.mubr.bf16.gmra.mrb[0].mxu0 %v660
    %v1039 = vpop.f32.mrb[0].mxu0
    %v1040 = vadd.f32 %v668, %v1039
    %v1041 = vpop.f32.mrb[0].mxu0
    %v1042 = vadd.f32 %v672, %v1041
    %v1043 = vpop.f32.mrb[0].mxu0
    %v1044 = vpop.f32.mrb[0].mxu0
    %1045 = vdwg.mxu0
    %1046 = vmatprep.subr.bf16.mxu0 %v880
    %1047 = vmatpush1.bf16.msra.mxu0 %v879
    %1048 = vmatprep.subr.bf16.mxu0 %v884
    %1049 = vmatpush1.bf16.msra.mxu0 %v883
    %1050 = vmatprep.subr.bf16.mxu0 %v888
    %1051 = vmatpush1.bf16.msra.mxu0 %v887
    %1052 = vmatprep.subr.bf16.mxu0 %v892
    %1053 = vmatpush1.bf16.msra.mxu0 %v891
    %1054 = vmatprep.subr.bf16.mxu0 %v896
    %1055 = vmatpush1.bf16.msra.mxu0 %v895
    %1056 = vmatprep.subr.bf16.mxu0 %v900
    %1057 = vmatpush1.bf16.msra.mxu0 %v899
    %1058 = vmatprep.subr.bf16.mxu0 %v904
    %1059 = vmatpush1.bf16.msra.mxu0 %v903
    %1060 = vmatprep.subr.bf16.mxu0 %v908
    %1061 = vmatpush1.bf16.msra.mxu0 %v907
    %1062 = vmatprep.subr.bf16.mxu0 %v912
    %1063 = vmatpush1.bf16.msra.mxu0 %v911
    %1064 = vmatprep.subr.bf16.mxu0 %v916
    %1065 = vmatpush1.bf16.msra.mxu0 %v915
    %1066 = vmatprep.subr.bf16.mxu0 %v920
    %1067 = vmatpush1.bf16.msra.mxu0 %v919
    %1068 = vmatprep.subr.bf16.mxu0 %v924
    %1069 = vmatpush1.bf16.msra.mxu0 %v923
    %1070 = vmatprep.subr.bf16.mxu0 %v928
    %1071 = vmatpush1.bf16.msra.mxu0 %v927
    %1072 = vmatprep.subr.bf16.mxu0 %v932
    %1073 = vmatpush1.bf16.msra.mxu0 %v931
    %1074 = vmatprep.subr.bf16.mxu0 %v936
    %1075 = vmatpush1.bf16.msra.mxu0 %v935
    %1076 = vmatprep.subr.bf16.mxu0 %v940
    %1077 = vmatpush1.bf16.msra.mxu0 %v939
    %1078 = vmatprep.mubr.bf16.mxu0 %v661
    %1079 = vmatmul.mubr.bf16.gmra.mrb[0].mxu0 %v660
    %v1080 = vpop.f32.mrb[0].mxu0
    %v1081 = vadd.f32 %v676, %v1080
    %v1082 = vpop.f32.mrb[0].mxu0
    %v1083 = vadd.f32 %v680, %v1082
    %v1084 = vpop.f32.mrb[0].mxu0
    %v1085 = vpop.f32.mrb[0].mxu0
    %1086 = vdwg.mxu0
    %vm1087 = vcmp.gt.f32.partialorder %v1040, 0.0
    %vm1088 = vcmp.gt.f32.partialorder %v1042, 0.0
    %vm1089 = vcmp.gt.f32.partialorder %v1081, 0.0
    %vm1090 = vcmp.gt.f32.partialorder %v1083, 0.0
    %v1091 = vmin.f32 %v1040, 0.0
    %v1092 = vmin.f32 %v1042, 0.0
    %v1093 = vmin.f32 %v1081, 0.0
    %v1094 = vmin.f32 %v1083, 0.0
    %v1095 = vmul.f32 %v1091, 1.442695
    %v1096 = vpow.pop %v1095
    %v1097 = vmul.f32 %v1092, 1.442695
    %v1098 = vpow.pop %v1097
    %v1099 = vmul.f32 %v1093, 1.442695
    %v1100 = vpow.pop %v1099
    %v1101 = vmul.f32 %v1094, 1.442695
    %v1102 = vpow.pop %v1101
    %v1103 = vsub.f32 %v1096, 1.0
    %v1104 = vsub.f32 %v1098, 1.0
    %v1105 = vsub.f32 %v1100, 1.0
    %v1106 = vsub.f32 %v1102, 1.0
    %v1107 = vmul.f32 %v1103, 2.0
    %v1108 = vmul.f32 %v1104, 2.0
    %v1109 = vmul.f32 %v1105, 2.0
    %v1110 = vmul.f32 %v1106, 2.0
    %v1111 = vsel %vm1087, %v1040, %v1107
    %v1112 = vsel %vm1088, %v1042, %v1108
    %v1113 = vsel %vm1089, %v1081, %v1109
    %v1114 = vsel %vm1090, %v1083, %v1110
    %v1115 = vadd.f32 %v1111, %v135
    %v1116 = vadd.f32 %v1112, %v136
    %v1117 = vadd.f32 %v1113, %v135
    %v1118 = vadd.f32 %v1114, %v136
    %v1119 = vadd.f32 %v1115, %v1117
    %v1120 = vadd.f32 %v1116, %v1118
    %s1121 = scalar_lea.vmem [#allocation3], 1024
    %v1122 = vld [vmem:[%s1121] sm:$0xff]
    %v1123 = vld [vmem:[%s1121 + $0x8] sm:$0xff]
    %v1124 = vld [vmem:[%s1121 + $0x10] sm:$0xff]
    %v1125 = vld [vmem:[%s1121 + $0x18] sm:$0xff]
    %v1126 = vld [vmem:[%s1121 + $0x20] sm:$0xff]
    %v1127 = vld [vmem:[%s1121 + $0x28] sm:$0xff]
    %v1128 = vld [vmem:[%s1121 + $0x30] sm:$0xff]
    %v1129 = vld [vmem:[%s1121 + $0x38] sm:$0xff]
    %v1130 = vld [vmem:[%s1121 + $0x40] sm:$0xff]
    %v1131 = vld [vmem:[%s1121 + $0x48] sm:$0xff]
    %v1132 = vld [vmem:[%s1121 + $0x50] sm:$0xff]
    %v1133 = vld [vmem:[%s1121 + $0x58] sm:$0xff]
    %v1134 = vld [vmem:[%s1121 + $0x60] sm:$0xff]
    %v1135 = vld [vmem:[%s1121 + $0x68] sm:$0xff]
    %v1136 = vld [vmem:[%s1121 + $0x70] sm:$0xff]
    %v1137 = vld [vmem:[%s1121 + $0x78] sm:$0xff]
    %v1138 = vld [vmem:[%s1121 + $0x80] sm:$0xff]
    %v1139 = vld [vmem:[%s1121 + $0x88] sm:$0xff]
    %v1140 = vld [vmem:[%s1121 + $0x90] sm:$0xff]
    %v1141 = vld [vmem:[%s1121 + $0x98] sm:$0xff]
    %v1142 = vld [vmem:[%s1121 + $0xa0] sm:$0xff]
    %v1143 = vld [vmem:[%s1121 + $0xa8] sm:$0xff]
    %v1144 = vld [vmem:[%s1121 + $0xb0] sm:$0xff]
    %v1145 = vld [vmem:[%s1121 + $0xb8] sm:$0xff]
    %v1146 = vld [vmem:[%s1121 + $0xc0] sm:$0xff]
    %v1147 = vld [vmem:[%s1121 + $0xc8] sm:$0xff]
    %v1148 = vld [vmem:[%s1121 + $0xd0] sm:$0xff]
    %v1149 = vld [vmem:[%s1121 + $0xd8] sm:$0xff]
    %v1150 = vld [vmem:[%s1121 + $0xe0] sm:$0xff]
    %v1151 = vld [vmem:[%s1121 + $0xe8] sm:$0xff]
    %v1152 = vld [vmem:[%s1121 + $0xf0] sm:$0xff]
    %v1153 = vld [vmem:[%s1121 + $0xf8] sm:$0xff]
    %v1154 = vld [vmem:[%s1121 + $0x100] sm:$0xff]
    %v1155 = vld [vmem:[%s1121 + $0x108] sm:$0xff]
    %v1156 = vld [vmem:[%s1121 + $0x110] sm:$0xff]
    %v1157 = vld [vmem:[%s1121 + $0x118] sm:$0xff]
    %v1158 = vld [vmem:[%s1121 + $0x120] sm:$0xff]
    %v1159 = vld [vmem:[%s1121 + $0x128] sm:$0xff]
    %v1160 = vld [vmem:[%s1121 + $0x130] sm:$0xff]
    %v1161 = vld [vmem:[%s1121 + $0x138] sm:$0xff]
    %v1162 = vld [vmem:[%s1121 + $0x140] sm:$0xff]
    %v1163 = vld [vmem:[%s1121 + $0x148] sm:$0xff]
    %v1164 = vld [vmem:[%s1121 + $0x150] sm:$0xff]
    %v1165 = vld [vmem:[%s1121 + $0x158] sm:$0xff]
    %v1166 = vld [vmem:[%s1121 + $0x160] sm:$0xff]
    %v1167 = vld [vmem:[%s1121 + $0x168] sm:$0xff]
    %v1168 = vld [vmem:[%s1121 + $0x170] sm:$0xff]
    %v1169 = vld [vmem:[%s1121 + $0x178] sm:$0xff]
    %v1170 = vld [vmem:[%s1121 + $0x180] sm:$0xff]
    %v1171 = vld [vmem:[%s1121 + $0x188] sm:$0xff]
    %v1172 = vld [vmem:[%s1121 + $0x190] sm:$0xff]
    %v1173 = vld [vmem:[%s1121 + $0x198] sm:$0xff]
    %v1174 = vld [vmem:[%s1121 + $0x1a0] sm:$0xff]
    %v1175 = vld [vmem:[%s1121 + $0x1a8] sm:$0xff]
    %v1176 = vld [vmem:[%s1121 + $0x1b0] sm:$0xff]
    %v1177 = vld [vmem:[%s1121 + $0x1b8] sm:$0xff]
    %v1178 = vld [vmem:[%s1121 + $0x1c0] sm:$0xff]
    %v1179 = vld [vmem:[%s1121 + $0x1c8] sm:$0xff]
    %v1180 = vld [vmem:[%s1121 + $0x1d0] sm:$0xff]
    %v1181 = vld [vmem:[%s1121 + $0x1d8] sm:$0xff]
    %v1182 = vld [vmem:[%s1121 + $0x1e0] sm:$0xff]
    %v1183 = vld [vmem:[%s1121 + $0x1e8] sm:$0xff]
    %v1184 = vld [vmem:[%s1121 + $0x1f0] sm:$0xff]
    %v1185 = vld [vmem:[%s1121 + $0x1f8] sm:$0xff]
    %v1186 = vpack.c.bf16 %v1119, %v1119
    %v1187 = vpack.c.bf16 %v1120, %v1120
    %s1188 = scalar_lea.vmem %s3, 8
    %v1189 = vld [vmem:[%s1188] sm:$0xf]
    %v1191 = vlaneseq
    %v1192 = vshrl.u32 %v1191, 7
    %v1193 = vsub.s32 0, %v1192
    %v1194 = vrot.slane %v1189, %v1193
    %v1195 = vlaneseq
    %v1196 = vshrl.u32 %v1195, 7
    %v1197 = vsub.s32 1, %v1196
    %v1198 = vrot.slane %v1189, %v1197
    %v1199 = vlaneseq
    %v1200 = vshrl.u32 %v1199, 7
    %v1201 = vsub.s32 2, %v1200
    %v1202 = vrot.slane %v1189, %v1201
    %v1203 = vlaneseq
    %v1204 = vshrl.u32 %v1203, 7
    %v1205 = vsub.s32 3, %v1204
    %v1206 = vrot.slane %v1189, %v1205
    %v1275 = vunpack.c.l.b16 %v1122
    %v1276 = vunpack.c.h.b16 %v1122
    %v1277 = vunpack.c.l.b16 %v1123
    %v1278 = vunpack.c.h.b16 %v1123
    %v1279 = vunpack.c.l.b16 %v1124
    %v1280 = vunpack.c.h.b16 %v1124
    %v1281 = vunpack.c.l.b16 %v1125
    %v1282 = vunpack.c.h.b16 %v1125
    %v1283 = vunpack.c.l.b16 %v1126
    %v1284 = vunpack.c.h.b16 %v1126
    %v1285 = vunpack.c.l.b16 %v1127
    %v1286 = vunpack.c.h.b16 %v1127
    %v1287 = vunpack.c.l.b16 %v1128
    %v1288 = vunpack.c.h.b16 %v1128
    %v1289 = vunpack.c.l.b16 %v1129
    %v1290 = vunpack.c.h.b16 %v1129
    %v1291 = vunpack.c.l.b16 %v1130
    %v1292 = vunpack.c.h.b16 %v1130
    %v1293 = vunpack.c.l.b16 %v1131
    %v1294 = vunpack.c.h.b16 %v1131
    %v1295 = vunpack.c.l.b16 %v1132
    %v1296 = vunpack.c.h.b16 %v1132
    %v1297 = vunpack.c.l.b16 %v1133
    %v1298 = vunpack.c.h.b16 %v1133
    %v1299 = vunpack.c.l.b16 %v1134
    %v1300 = vunpack.c.h.b16 %v1134
    %v1301 = vunpack.c.l.b16 %v1135
    %v1302 = vunpack.c.h.b16 %v1135
    %v1303 = vunpack.c.l.b16 %v1136
    %v1304 = vunpack.c.h.b16 %v1136
    %v1305 = vunpack.c.l.b16 %v1137
    %v1306 = vunpack.c.h.b16 %v1137
    %v1307 = vunpack.c.l.b16 %v1138
    %v1308 = vunpack.c.h.b16 %v1138
    %v1309 = vunpack.c.l.b16 %v1139
    %v1310 = vunpack.c.h.b16 %v1139
    %v1311 = vunpack.c.l.b16 %v1140
    %v1312 = vunpack.c.h.b16 %v1140
    %v1313 = vunpack.c.l.b16 %v1141
    %v1314 = vunpack.c.h.b16 %v1141
    %v1315 = vunpack.c.l.b16 %v1142
    %v1316 = vunpack.c.h.b16 %v1142
    %v1317 = vunpack.c.l.b16 %v1143
    %v1318 = vunpack.c.h.b16 %v1143
    %v1319 = vunpack.c.l.b16 %v1144
    %v1320 = vunpack.c.h.b16 %v1144
    %v1321 = vunpack.c.l.b16 %v1145
    %v1322 = vunpack.c.h.b16 %v1145
    %v1323 = vunpack.c.l.b16 %v1146
    %v1324 = vunpack.c.h.b16 %v1146
    %v1325 = vunpack.c.l.b16 %v1147
    %v1326 = vunpack.c.h.b16 %v1147
    %v1327 = vunpack.c.l.b16 %v1148
    %v1328 = vunpack.c.h.b16 %v1148
    %v1329 = vunpack.c.l.b16 %v1149
    %v1330 = vunpack.c.h.b16 %v1149
    %v1331 = vunpack.c.l.b16 %v1150
    %v1332 = vunpack.c.h.b16 %v1150
    %v1333 = vunpack.c.l.b16 %v1151
    %v1334 = vunpack.c.h.b16 %v1151
    %v1335 = vunpack.c.l.b16 %v1152
    %v1336 = vunpack.c.h.b16 %v1152
    %v1337 = vunpack.c.l.b16 %v1153
    %v1338 = vunpack.c.h.b16 %v1153
    %v1339 = vunpack.c.l.b16 %v1154
    %v1340 = vunpack.c.h.b16 %v1154
    %v1341 = vunpack.c.l.b16 %v1155
    %v1342 = vunpack.c.h.b16 %v1155
    %v1343 = vunpack.c.l.b16 %v1156
    %v1344 = vunpack.c.h.b16 %v1156
    %v1345 = vunpack.c.l.b16 %v1157
    %v1346 = vunpack.c.h.b16 %v1157
    %v1347 = vunpack.c.l.b16 %v1158
    %v1348 = vunpack.c.h.b16 %v1158
    %v1349 = vunpack.c.l.b16 %v1159
    %v1350 = vunpack.c.h.b16 %v1159
    %v1351 = vunpack.c.l.b16 %v1160
    %v1352 = vunpack.c.h.b16 %v1160
    %v1353 = vunpack.c.l.b16 %v1161
    %v1354 = vunpack.c.h.b16 %v1161
    %v1355 = vunpack.c.l.b16 %v1162
    %v1356 = vunpack.c.h.b16 %v1162
    %v1357 = vunpack.c.l.b16 %v1163
    %v1358 = vunpack.c.h.b16 %v1163
    %v1359 = vunpack.c.l.b16 %v1164
    %v1360 = vunpack.c.h.b16 %v1164
    %v1361 = vunpack.c.l.b16 %v1165
    %v1362 = vunpack.c.h.b16 %v1165
    %v1363 = vunpack.c.l.b16 %v1166
    %v1364 = vunpack.c.h.b16 %v1166
    %v1365 = vunpack.c.l.b16 %v1167
    %v1366 = vunpack.c.h.b16 %v1167
    %v1367 = vunpack.c.l.b16 %v1168
    %v1368 = vunpack.c.h.b16 %v1168
    %v1369 = vunpack.c.l.b16 %v1169
    %v1370 = vunpack.c.h.b16 %v1169
    %v1371 = vunpack.c.l.b16 %v1170
    %v1372 = vunpack.c.h.b16 %v1170
    %v1373 = vunpack.c.l.b16 %v1171
    %v1374 = vunpack.c.h.b16 %v1171
    %v1375 = vunpack.c.l.b16 %v1172
    %v1376 = vunpack.c.h.b16 %v1172
    %v1377 = vunpack.c.l.b16 %v1173
    %v1378 = vunpack.c.h.b16 %v1173
    %v1379 = vunpack.c.l.b16 %v1174
    %v1380 = vunpack.c.h.b16 %v1174
    %v1381 = vunpack.c.l.b16 %v1175
    %v1382 = vunpack.c.h.b16 %v1175
    %v1383 = vunpack.c.l.b16 %v1176
    %v1384 = vunpack.c.h.b16 %v1176
    %v1385 = vunpack.c.l.b16 %v1177
    %v1386 = vunpack.c.h.b16 %v1177
    %v1387 = vunpack.c.l.b16 %v1178
    %v1388 = vunpack.c.h.b16 %v1178
    %v1389 = vunpack.c.l.b16 %v1179
    %v1390 = vunpack.c.h.b16 %v1179
    %v1391 = vunpack.c.l.b16 %v1180
    %v1392 = vunpack.c.h.b16 %v1180
    %v1393 = vunpack.c.l.b16 %v1181
    %v1394 = vunpack.c.h.b16 %v1181
    %v1395 = vunpack.c.l.b16 %v1182
    %v1396 = vunpack.c.h.b16 %v1182
    %v1397 = vunpack.c.l.b16 %v1183
    %v1398 = vunpack.c.h.b16 %v1183
    %v1399 = vunpack.c.l.b16 %v1184
    %v1400 = vunpack.c.h.b16 %v1184
    %v1401 = vunpack.c.l.b16 %v1185
    %v1402 = vunpack.c.h.b16 %v1185
    %v1403 = vpack.c.b16 %v1279, %v1275
    %v1404 = vpack.c.b16 %v1280, %v1276
    %v1405 = vpack.c.b16 %v1281, %v1277
    %v1406 = vpack.c.b16 %v1282, %v1278
    %v1407 = vpack.c.b16 %v1287, %v1283
    %v1408 = vpack.c.b16 %v1288, %v1284
    %v1409 = vpack.c.b16 %v1289, %v1285
    %v1410 = vpack.c.b16 %v1290, %v1286
    %v1411 = vpack.c.b16 %v1295, %v1291
    %v1412 = vpack.c.b16 %v1296, %v1292
    %v1413 = vpack.c.b16 %v1297, %v1293
    %v1414 = vpack.c.b16 %v1298, %v1294
    %v1415 = vpack.c.b16 %v1303, %v1299
    %v1416 = vpack.c.b16 %v1304, %v1300
    %v1417 = vpack.c.b16 %v1305, %v1301
    %v1418 = vpack.c.b16 %v1306, %v1302
    %v1419 = vpack.c.b16 %v1311, %v1307
    %v1420 = vpack.c.b16 %v1312, %v1308
    %v1421 = vpack.c.b16 %v1313, %v1309
    %v1422 = vpack.c.b16 %v1314, %v1310
    %v1423 = vpack.c.b16 %v1319, %v1315
    %v1424 = vpack.c.b16 %v1320, %v1316
    %v1425 = vpack.c.b16 %v1321, %v1317
    %v1426 = vpack.c.b16 %v1322, %v1318
    %v1427 = vpack.c.b16 %v1327, %v1323
    %v1428 = vpack.c.b16 %v1328, %v1324
    %v1429 = vpack.c.b16 %v1329, %v1325
    %v1430 = vpack.c.b16 %v1330, %v1326
    %v1431 = vpack.c.b16 %v1335, %v1331
    %v1432 = vpack.c.b16 %v1336, %v1332
    %v1433 = vpack.c.b16 %v1337, %v1333
    %v1434 = vpack.c.b16 %v1338, %v1334
    %v1435 = vpack.c.b16 %v1343, %v1339
    %v1436 = vpack.c.b16 %v1344, %v1340
    %v1437 = vpack.c.b16 %v1345, %v1341
    %v1438 = vpack.c.b16 %v1346, %v1342
    %v1439 = vpack.c.b16 %v1351, %v1347
    %v1440 = vpack.c.b16 %v1352, %v1348
    %v1441 = vpack.c.b16 %v1353, %v1349
    %v1442 = vpack.c.b16 %v1354, %v1350
    %v1443 = vpack.c.b16 %v1359, %v1355
    %v1444 = vpack.c.b16 %v1360, %v1356
    %v1445 = vpack.c.b16 %v1361, %v1357
    %v1446 = vpack.c.b16 %v1362, %v1358
    %v1447 = vpack.c.b16 %v1367, %v1363
    %v1448 = vpack.c.b16 %v1368, %v1364
    %v1449 = vpack.c.b16 %v1369, %v1365
    %v1450 = vpack.c.b16 %v1370, %v1366
    %v1451 = vpack.c.b16 %v1375, %v1371
    %v1452 = vpack.c.b16 %v1376, %v1372
    %v1453 = vpack.c.b16 %v1377, %v1373
    %v1454 = vpack.c.b16 %v1378, %v1374
    %v1455 = vpack.c.b16 %v1383, %v1379
    %v1456 = vpack.c.b16 %v1384, %v1380
    %v1457 = vpack.c.b16 %v1385, %v1381
    %v1458 = vpack.c.b16 %v1386, %v1382
    %v1459 = vpack.c.b16 %v1391, %v1387
    %v1460 = vpack.c.b16 %v1392, %v1388
    %v1461 = vpack.c.b16 %v1393, %v1389
    %v1462 = vpack.c.b16 %v1394, %v1390
    %v1463 = vpack.c.b16 %v1399, %v1395
    %v1464 = vpack.c.b16 %v1400, %v1396
    %v1465 = vpack.c.b16 %v1401, %v1397
    %v1466 = vpack.c.b16 %v1402, %v1398
    %1531 = vmatprep.subr.bf16.mxu0 %v1404
    %1532 = vmatpush1.bf16.msra.mxu0 %v1403
    %1533 = vmatprep.subr.bf16.mxu0 %v1408
    %1534 = vmatpush1.bf16.msra.mxu0 %v1407
    %1535 = vmatprep.subr.bf16.mxu0 %v1412
    %1536 = vmatpush1.bf16.msra.mxu0 %v1411
    %1537 = vmatprep.subr.bf16.mxu0 %v1416
    %1538 = vmatpush1.bf16.msra.mxu0 %v1415
    %1539 = vmatprep.subr.bf16.mxu0 %v1420
    %1540 = vmatpush1.bf16.msra.mxu0 %v1419
    %1541 = vmatprep.subr.bf16.mxu0 %v1424
    %1542 = vmatpush1.bf16.msra.mxu0 %v1423
    %1543 = vmatprep.subr.bf16.mxu0 %v1428
    %1544 = vmatpush1.bf16.msra.mxu0 %v1427
    %1545 = vmatprep.subr.bf16.mxu0 %v1432
    %1546 = vmatpush1.bf16.msra.mxu0 %v1431
    %1547 = vmatprep.subr.bf16.mxu0 %v1436
    %1548 = vmatpush1.bf16.msra.mxu0 %v1435
    %1549 = vmatprep.subr.bf16.mxu0 %v1440
    %1550 = vmatpush1.bf16.msra.mxu0 %v1439
    %1551 = vmatprep.subr.bf16.mxu0 %v1444
    %1552 = vmatpush1.bf16.msra.mxu0 %v1443
    %1553 = vmatprep.subr.bf16.mxu0 %v1448
    %1554 = vmatpush1.bf16.msra.mxu0 %v1447
    %1555 = vmatprep.subr.bf16.mxu0 %v1452
    %1556 = vmatpush1.bf16.msra.mxu0 %v1451
    %1557 = vmatprep.subr.bf16.mxu0 %v1456
    %1558 = vmatpush1.bf16.msra.mxu0 %v1455
    %1559 = vmatprep.subr.bf16.mxu0 %v1460
    %1560 = vmatpush1.bf16.msra.mxu0 %v1459
    %1561 = vmatprep.subr.bf16.mxu0 %v1464
    %1562 = vmatpush1.bf16.msra.mxu0 %v1463
    %1563 = vmatprep.mubr.bf16.mxu0 %v1187
    %1564 = vmatmul.mubr.bf16.gmra.mrb[0].mxu0 %v1186
    %v1565 = vpop.f32.mrb[0].mxu0
    %v1566 = vadd.f32 %v1194, %v1565
    %v1567 = vpop.f32.mrb[0].mxu0
    %v1568 = vadd.f32 %v1198, %v1567
    %v1569 = vpop.f32.mrb[0].mxu0
    %v1570 = vpop.f32.mrb[0].mxu0
    %1571 = vdwg.mxu0
    %1572 = vmatprep.subr.bf16.mxu0 %v1406
    %1573 = vmatpush1.bf16.msra.mxu0 %v1405
    %1574 = vmatprep.subr.bf16.mxu0 %v1410
    %1575 = vmatpush1.bf16.msra.mxu0 %v1409
    %1576 = vmatprep.subr.bf16.mxu0 %v1414
    %1577 = vmatpush1.bf16.msra.mxu0 %v1413
    %1578 = vmatprep.subr.bf16.mxu0 %v1418
    %1579 = vmatpush1.bf16.msra.mxu0 %v1417
    %1580 = vmatprep.subr.bf16.mxu0 %v1422
    %1581 = vmatpush1.bf16.msra.mxu0 %v1421
    %1582 = vmatprep.subr.bf16.mxu0 %v1426
    %1583 = vmatpush1.bf16.msra.mxu0 %v1425
    %1584 = vmatprep.subr.bf16.mxu0 %v1430
    %1585 = vmatpush1.bf16.msra.mxu0 %v1429
    %1586 = vmatprep.subr.bf16.mxu0 %v1434
    %1587 = vmatpush1.bf16.msra.mxu0 %v1433
    %1588 = vmatprep.subr.bf16.mxu0 %v1438
    %1589 = vmatpush1.bf16.msra.mxu0 %v1437
    %1590 = vmatprep.subr.bf16.mxu0 %v1442
    %1591 = vmatpush1.bf16.msra.mxu0 %v1441
    %1592 = vmatprep.subr.bf16.mxu0 %v1446
    %1593 = vmatpush1.bf16.msra.mxu0 %v1445
    %1594 = vmatprep.subr.bf16.mxu0 %v1450
    %1595 = vmatpush1.bf16.msra.mxu0 %v1449
    %1596 = vmatprep.subr.bf16.mxu0 %v1454
    %1597 = vmatpush1.bf16.msra.mxu0 %v1453
    %1598 = vmatprep.subr.bf16.mxu0 %v1458
    %1599 = vmatpush1.bf16.msra.mxu0 %v1457
    %1600 = vmatprep.subr.bf16.mxu0 %v1462
    %1601 = vmatpush1.bf16.msra.mxu0 %v1461
    %1602 = vmatprep.subr.bf16.mxu0 %v1466
    %1603 = vmatpush1.bf16.msra.mxu0 %v1465
    %1604 = vmatprep.mubr.bf16.mxu0 %v1187
    %1605 = vmatmul.mubr.bf16.gmra.mrb[0].mxu0 %v1186
    %v1606 = vpop.f32.mrb[0].mxu0
    %v1607 = vadd.f32 %v1202, %v1606
    %v1608 = vpop.f32.mrb[0].mxu0
    %v1609 = vadd.f32 %v1206, %v1608
    %v1610 = vpop.f32.mrb[0].mxu0
    %v1611 = vpop.f32.mrb[0].mxu0
    %1612 = vdwg.mxu0
    %vm1613 = vcmp.gt.f32.partialorder %v1566, 0.0
    %vm1614 = vcmp.gt.f32.partialorder %v1568, 0.0
    %vm1615 = vcmp.gt.f32.partialorder %v1607, 0.0
    %vm1616 = vcmp.gt.f32.partialorder %v1609, 0.0
    %v1617 = vmin.f32 %v1566, 0.0
    %v1618 = vmin.f32 %v1568, 0.0
    %v1619 = vmin.f32 %v1607, 0.0
    %v1620 = vmin.f32 %v1609, 0.0
    %v1621 = vmul.f32 %v1617, 1.442695
    %v1622 = vpow.pop %v1621
    %v1623 = vmul.f32 %v1618, 1.442695
    %v1624 = vpow.pop %v1623
    %v1625 = vmul.f32 %v1619, 1.442695
    %v1626 = vpow.pop %v1625
    %v1627 = vmul.f32 %v1620, 1.442695
    %v1628 = vpow.pop %v1627
    %v1629 = vsub.f32 %v1622, 1.0
    %v1630 = vsub.f32 %v1624, 1.0
    %v1631 = vsub.f32 %v1626, 1.0
    %v1632 = vsub.f32 %v1628, 1.0
    %v1633 = vmul.f32 %v1629, 2.0
    %v1634 = vmul.f32 %v1630, 2.0
    %v1635 = vmul.f32 %v1631, 2.0
    %v1636 = vmul.f32 %v1632, 2.0
    %v1637 = vsel %vm1613, %v1566, %v1633
    %v1638 = vsel %vm1614, %v1568, %v1634
    %v1639 = vsel %vm1615, %v1607, %v1635
    %v1640 = vsel %vm1616, %v1609, %v1636
    %v1641 = vadd.f32 %v1637, %v593
    %v1642 = vadd.f32 %v1638, %v594
    %v1643 = vadd.f32 %v1639, %v593
    %v1644 = vadd.f32 %v1640, %v594
    %v1645 = vadd.f32 %v1641, %v1643
    %v1646 = vadd.f32 %v1642, %v1644
    %s1647 = scalar_lea.vmem [#allocation3], 1536
    %v1648 = vld [vmem:[%s1647] sm:$0xff]
    %v1649 = vld [vmem:[%s1647 + $0x8] sm:$0xff]
    %v1650 = vld [vmem:[%s1647 + $0x10] sm:$0xff]
    %v1651 = vld [vmem:[%s1647 + $0x18] sm:$0xff]
    %v1652 = vld [vmem:[%s1647 + $0x20] sm:$0xff]
    %v1653 = vld [vmem:[%s1647 + $0x28] sm:$0xff]
    %v1654 = vld [vmem:[%s1647 + $0x30] sm:$0xff]
    %v1655 = vld [vmem:[%s1647 + $0x38] sm:$0xff]
    %v1656 = vld [vmem:[%s1647 + $0x40] sm:$0xff]
    %v1657 = vld [vmem:[%s1647 + $0x48] sm:$0xff]
    %v1658 = vld [vmem:[%s1647 + $0x50] sm:$0xff]
    %v1659 = vld [vmem:[%s1647 + $0x58] sm:$0xff]
    %v1660 = vld [vmem:[%s1647 + $0x60] sm:$0xff]
    %v1661 = vld [vmem:[%s1647 + $0x68] sm:$0xff]
    %v1662 = vld [vmem:[%s1647 + $0x70] sm:$0xff]
    %v1663 = vld [vmem:[%s1647 + $0x78] sm:$0xff]
    %v1664 = vld [vmem:[%s1647 + $0x80] sm:$0xff]
    %v1665 = vld [vmem:[%s1647 + $0x88] sm:$0xff]
    %v1666 = vld [vmem:[%s1647 + $0x90] sm:$0xff]
    %v1667 = vld [vmem:[%s1647 + $0x98] sm:$0xff]
    %v1668 = vld [vmem:[%s1647 + $0xa0] sm:$0xff]
    %v1669 = vld [vmem:[%s1647 + $0xa8] sm:$0xff]
    %v1670 = vld [vmem:[%s1647 + $0xb0] sm:$0xff]
    %v1671 = vld [vmem:[%s1647 + $0xb8] sm:$0xff]
    %v1672 = vld [vmem:[%s1647 + $0xc0] sm:$0xff]
    %v1673 = vld [vmem:[%s1647 + $0xc8] sm:$0xff]
    %v1674 = vld [vmem:[%s1647 + $0xd0] sm:$0xff]
    %v1675 = vld [vmem:[%s1647 + $0xd8] sm:$0xff]
    %v1676 = vld [vmem:[%s1647 + $0xe0] sm:$0xff]
    %v1677 = vld [vmem:[%s1647 + $0xe8] sm:$0xff]
    %v1678 = vld [vmem:[%s1647 + $0xf0] sm:$0xff]
    %v1679 = vld [vmem:[%s1647 + $0xf8] sm:$0xff]
    %v1680 = vld [vmem:[%s1647 + $0x100] sm:$0xff]
    %v1681 = vld [vmem:[%s1647 + $0x108] sm:$0xff]
    %v1682 = vld [vmem:[%s1647 + $0x110] sm:$0xff]
    %v1683 = vld [vmem:[%s1647 + $0x118] sm:$0xff]
    %v1684 = vld [vmem:[%s1647 + $0x120] sm:$0xff]
    %v1685 = vld [vmem:[%s1647 + $0x128] sm:$0xff]
    %v1686 = vld [vmem:[%s1647 + $0x130] sm:$0xff]
    %v1687 = vld [vmem:[%s1647 + $0x138] sm:$0xff]
    %v1688 = vld [vmem:[%s1647 + $0x140] sm:$0xff]
    %v1689 = vld [vmem:[%s1647 + $0x148] sm:$0xff]
    %v1690 = vld [vmem:[%s1647 + $0x150] sm:$0xff]
    %v1691 = vld [vmem:[%s1647 + $0x158] sm:$0xff]
    %v1692 = vld [vmem:[%s1647 + $0x160] sm:$0xff]
    %v1693 = vld [vmem:[%s1647 + $0x168] sm:$0xff]
    %v1694 = vld [vmem:[%s1647 + $0x170] sm:$0xff]
    %v1695 = vld [vmem:[%s1647 + $0x178] sm:$0xff]
    %v1696 = vld [vmem:[%s1647 + $0x180] sm:$0xff]
    %v1697 = vld [vmem:[%s1647 + $0x188] sm:$0xff]
    %v1698 = vld [vmem:[%s1647 + $0x190] sm:$0xff]
    %v1699 = vld [vmem:[%s1647 + $0x198] sm:$0xff]
    %v1700 = vld [vmem:[%s1647 + $0x1a0] sm:$0xff]
    %v1701 = vld [vmem:[%s1647 + $0x1a8] sm:$0xff]
    %v1702 = vld [vmem:[%s1647 + $0x1b0] sm:$0xff]
    %v1703 = vld [vmem:[%s1647 + $0x1b8] sm:$0xff]
    %v1704 = vld [vmem:[%s1647 + $0x1c0] sm:$0xff]
    %v1705 = vld [vmem:[%s1647 + $0x1c8] sm:$0xff]
    %v1706 = vld [vmem:[%s1647 + $0x1d0] sm:$0xff]
    %v1707 = vld [vmem:[%s1647 + $0x1d8] sm:$0xff]
    %v1708 = vld [vmem:[%s1647 + $0x1e0] sm:$0xff]
    %v1709 = vld [vmem:[%s1647 + $0x1e8] sm:$0xff]
    %v1710 = vld [vmem:[%s1647 + $0x1f0] sm:$0xff]
    %v1711 = vld [vmem:[%s1647 + $0x1f8] sm:$0xff]
    %v1712 = vpack.c.bf16 %v1645, %v1645
    %v1713 = vpack.c.bf16 %v1646, %v1646
    %s1714 = scalar_lea.vmem %s3, 12
    %v1715 = vld [vmem:[%s1714] sm:$0xf]
    %v1717 = vlaneseq
    %v1718 = vshrl.u32 %v1717, 7
    %v1719 = vsub.s32 0, %v1718
    %v1720 = vrot.slane %v1715, %v1719
    %v1721 = vlaneseq
    %v1722 = vshrl.u32 %v1721, 7
    %v1723 = vsub.s32 1, %v1722
    %v1724 = vrot.slane %v1715, %v1723
    %v1725 = vlaneseq
    %v1726 = vshrl.u32 %v1725, 7
    %v1727 = vsub.s32 2, %v1726
    %v1728 = vrot.slane %v1715, %v1727
    %v1729 = vlaneseq
    %v1730 = vshrl.u32 %v1729, 7
    %v1731 = vsub.s32 3, %v1730
    %v1732 = vrot.slane %v1715, %v1731
    %v1801 = vunpack.c.l.b16 %v1648
    %v1802 = vunpack.c.h.b16 %v1648
    %v1803 = vunpack.c.l.b16 %v1649
    %v1804 = vunpack.c.h.b16 %v1649
    %v1805 = vunpack.c.l.b16 %v1650
    %v1806 = vunpack.c.h.b16 %v1650
    %v1807 = vunpack.c.l.b16 %v1651
    %v1808 = vunpack.c.h.b16 %v1651
    %v1809 = vunpack.c.l.b16 %v1652
    %v1810 = vunpack.c.h.b16 %v1652
    %v1811 = vunpack.c.l.b16 %v1653
    %v1812 = vunpack.c.h.b16 %v1653
    %v1813 = vunpack.c.l.b16 %v1654
    %v1814 = vunpack.c.h.b16 %v1654
    %v1815 = vunpack.c.l.b16 %v1655
    %v1816 = vunpack.c.h.b16 %v1655
    %v1817 = vunpack.c.l.b16 %v1656
    %v1818 = vunpack.c.h.b16 %v1656
    %v1819 = vunpack.c.l.b16 %v1657
    %v1820 = vunpack.c.h.b16 %v1657
    %v1821 = vunpack.c.l.b16 %v1658
    %v1822 = vunpack.c.h.b16 %v1658
    %v1823 = vunpack.c.l.b16 %v1659
    %v1824 = vunpack.c.h.b16 %v1659
    %v1825 = vunpack.c.l.b16 %v1660
    %v1826 = vunpack.c.h.b16 %v1660
    %v1827 = vunpack.c.l.b16 %v1661
    %v1828 = vunpack.c.h.b16 %v1661
    %v1829 = vunpack.c.l.b16 %v1662
    %v1830 = vunpack.c.h.b16 %v1662
    %v1831 = vunpack.c.l.b16 %v1663
    %v1832 = vunpack.c.h.b16 %v1663
    %v1833 = vunpack.c.l.b16 %v1664
    %v1834 = vunpack.c.h.b16 %v1664
    %v1835 = vunpack.c.l.b16 %v1665
    %v1836 = vunpack.c.h.b16 %v1665
    %v1837 = vunpack.c.l.b16 %v1666
    %v1838 = vunpack.c.h.b16 %v1666
    %v1839 = vunpack.c.l.b16 %v1667
    %v1840 = vunpack.c.h.b16 %v1667
    %v1841 = vunpack.c.l.b16 %v1668
    %v1842 = vunpack.c.h.b16 %v1668
    %v1843 = vunpack.c.l.b16 %v1669
    %v1844 = vunpack.c.h.b16 %v1669
    %v1845 = vunpack.c.l.b16 %v1670
    %v1846 = vunpack.c.h.b16 %v1670
    %v1847 = vunpack.c.l.b16 %v1671
    %v1848 = vunpack.c.h.b16 %v1671
    %v1849 = vunpack.c.l.b16 %v1672
    %v1850 = vunpack.c.h.b16 %v1672
    %v1851 = vunpack.c.l.b16 %v1673
    %v1852 = vunpack.c.h.b16 %v1673
    %v1853 = vunpack.c.l.b16 %v1674
    %v1854 = vunpack.c.h.b16 %v1674
    %v1855 = vunpack.c.l.b16 %v1675
    %v1856 = vunpack.c.h.b16 %v1675
    %v1857 = vunpack.c.l.b16 %v1676
    %v1858 = vunpack.c.h.b16 %v1676
    %v1859 = vunpack.c.l.b16 %v1677
    %v1860 = vunpack.c.h.b16 %v1677
    %v1861 = vunpack.c.l.b16 %v1678
    %v1862 = vunpack.c.h.b16 %v1678
    %v1863 = vunpack.c.l.b16 %v1679
    %v1864 = vunpack.c.h.b16 %v1679
    %v1865 = vunpack.c.l.b16 %v1680
    %v1866 = vunpack.c.h.b16 %v1680
    %v1867 = vunpack.c.l.b16 %v1681
    %v1868 = vunpack.c.h.b16 %v1681
    %v1869 = vunpack.c.l.b16 %v1682
    %v1870 = vunpack.c.h.b16 %v1682
    %v1871 = vunpack.c.l.b16 %v1683
    %v1872 = vunpack.c.h.b16 %v1683
    %v1873 = vunpack.c.l.b16 %v1684
    %v1874 = vunpack.c.h.b16 %v1684
    %v1875 = vunpack.c.l.b16 %v1685
    %v1876 = vunpack.c.h.b16 %v1685
    %v1877 = vunpack.c.l.b16 %v1686
    %v1878 = vunpack.c.h.b16 %v1686
    %v1879 = vunpack.c.l.b16 %v1687
    %v1880 = vunpack.c.h.b16 %v1687
    %v1881 = vunpack.c.l.b16 %v1688
    %v1882 = vunpack.c.h.b16 %v1688
    %v1883 = vunpack.c.l.b16 %v1689
    %v1884 = vunpack.c.h.b16 %v1689
    %v1885 = vunpack.c.l.b16 %v1690
    %v1886 = vunpack.c.h.b16 %v1690
    %v1887 = vunpack.c.l.b16 %v1691
    %v1888 = vunpack.c.h.b16 %v1691
    %v1889 = vunpack.c.l.b16 %v1692
    %v1890 = vunpack.c.h.b16 %v1692
    %v1891 = vunpack.c.l.b16 %v1693
    %v1892 = vunpack.c.h.b16 %v1693
    %v1893 = vunpack.c.l.b16 %v1694
    %v1894 = vunpack.c.h.b16 %v1694
    %v1895 = vunpack.c.l.b16 %v1695
    %v1896 = vunpack.c.h.b16 %v1695
    %v1897 = vunpack.c.l.b16 %v1696
    %v1898 = vunpack.c.h.b16 %v1696
    %v1899 = vunpack.c.l.b16 %v1697
    %v1900 = vunpack.c.h.b16 %v1697
    %v1901 = vunpack.c.l.b16 %v1698
    %v1902 = vunpack.c.h.b16 %v1698
    %v1903 = vunpack.c.l.b16 %v1699
    %v1904 = vunpack.c.h.b16 %v1699
    %v1905 = vunpack.c.l.b16 %v1700
    %v1906 = vunpack.c.h.b16 %v1700
    %v1907 = vunpack.c.l.b16 %v1701
    %v1908 = vunpack.c.h.b16 %v1701
    %v1909 = vunpack.c.l.b16 %v1702
    %v1910 = vunpack.c.h.b16 %v1702
    %v1911 = vunpack.c.l.b16 %v1703
    %v1912 = vunpack.c.h.b16 %v1703
    %v1913 = vunpack.c.l.b16 %v1704
    %v1914 = vunpack.c.h.b16 %v1704
    %v1915 = vunpack.c.l.b16 %v1705
    %v1916 = vunpack.c.h.b16 %v1705
    %v1917 = vunpack.c.l.b16 %v1706
    %v1918 = vunpack.c.h.b16 %v1706
    %v1919 = vunpack.c.l.b16 %v1707
    %v1920 = vunpack.c.h.b16 %v1707
    %v1921 = vunpack.c.l.b16 %v1708
    %v1922 = vunpack.c.h.b16 %v1708
    %v1923 = vunpack.c.l.b16 %v1709
    %v1924 = vunpack.c.h.b16 %v1709
    %v1925 = vunpack.c.l.b16 %v1710
    %v1926 = vunpack.c.h.b16 %v1710
    %v1927 = vunpack.c.l.b16 %v1711
    %v1928 = vunpack.c.h.b16 %v1711
    %v1929 = vpack.c.b16 %v1805, %v1801
    %v1930 = vpack.c.b16 %v1806, %v1802
    %v1931 = vpack.c.b16 %v1807, %v1803
    %v1932 = vpack.c.b16 %v1808, %v1804
    %v1933 = vpack.c.b16 %v1813, %v1809
    %v1934 = vpack.c.b16 %v1814, %v1810
    %v1935 = vpack.c.b16 %v1815, %v1811
    %v1936 = vpack.c.b16 %v1816, %v1812
    %v1937 = vpack.c.b16 %v1821, %v1817
    %v1938 = vpack.c.b16 %v1822, %v1818
    %v1939 = vpack.c.b16 %v1823, %v1819
    %v1940 = vpack.c.b16 %v1824, %v1820
    %v1941 = vpack.c.b16 %v1829, %v1825
    %v1942 = vpack.c.b16 %v1830, %v1826
    %v1943 = vpack.c.b16 %v1831, %v1827
    %v1944 = vpack.c.b16 %v1832, %v1828
    %v1945 = vpack.c.b16 %v1837, %v1833
    %v1946 = vpack.c.b16 %v1838, %v1834
    %v1947 = vpack.c.b16 %v1839, %v1835
    %v1948 = vpack.c.b16 %v1840, %v1836
    %v1949 = vpack.c.b16 %v1845, %v1841
    %v1950 = vpack.c.b16 %v1846, %v1842
    %v1951 = vpack.c.b16 %v1847, %v1843
    %v1952 = vpack.c.b16 %v1848, %v1844
    %v1953 = vpack.c.b16 %v1853, %v1849
    %v1954 = vpack.c.b16 %v1854, %v1850
    %v1955 = vpack.c.b16 %v1855, %v1851
    %v1956 = vpack.c.b16 %v1856, %v1852
    %v1957 = vpack.c.b16 %v1861, %v1857
    %v1958 = vpack.c.b16 %v1862, %v1858
    %v1959 = vpack.c.b16 %v1863, %v1859
    %v1960 = vpack.c.b16 %v1864, %v1860
    %v1961 = vpack.c.b16 %v1869, %v1865
    %v1962 = vpack.c.b16 %v1870, %v1866
    %v1963 = vpack.c.b16 %v1871, %v1867
    %v1964 = vpack.c.b16 %v1872, %v1868
    %v1965 = vpack.c.b16 %v1877, %v1873
    %v1966 = vpack.c.b16 %v1878, %v1874
    %v1967 = vpack.c.b16 %v1879, %v1875
    %v1968 = vpack.c.b16 %v1880, %v1876
    %v1969 = vpack.c.b16 %v1885, %v1881
    %v1970 = vpack.c.b16 %v1886, %v1882
    %v1971 = vpack.c.b16 %v1887, %v1883
    %v1972 = vpack.c.b16 %v1888, %v1884
    %v1973 = vpack.c.b16 %v1893, %v1889
    %v1974 = vpack.c.b16 %v1894, %v1890
    %v1975 = vpack.c.b16 %v1895, %v1891
    %v1976 = vpack.c.b16 %v1896, %v1892
    %v1977 = vpack.c.b16 %v1901, %v1897
    %v1978 = vpack.c.b16 %v1902, %v1898
    %v1979 = vpack.c.b16 %v1903, %v1899
    %v1980 = vpack.c.b16 %v1904, %v1900
    %v1981 = vpack.c.b16 %v1909, %v1905
    %v1982 = vpack.c.b16 %v1910, %v1906
    %v1983 = vpack.c.b16 %v1911, %v1907
    %v1984 = vpack.c.b16 %v1912, %v1908
    %v1985 = vpack.c.b16 %v1917, %v1913
    %v1986 = vpack.c.b16 %v1918, %v1914
    %v1987 = vpack.c.b16 %v1919, %v1915
    %v1988 = vpack.c.b16 %v1920, %v1916
    %v1989 = vpack.c.b16 %v1925, %v1921
    %v1990 = vpack.c.b16 %v1926, %v1922
    %v1991 = vpack.c.b16 %v1927, %v1923
    %v1992 = vpack.c.b16 %v1928, %v1924
    %2057 = vmatprep.subr.bf16.mxu0 %v1930
    %2058 = vmatpush1.bf16.msra.mxu0 %v1929
    %2059 = vmatprep.subr.bf16.mxu0 %v1934
    %2060 = vmatpush1.bf16.msra.mxu0 %v1933
    %2061 = vmatprep.subr.bf16.mxu0 %v1938
    %2062 = vmatpush1.bf16.msra.mxu0 %v1937
    %2063 = vmatprep.subr.bf16.mxu0 %v1942
    %2064 = vmatpush1.bf16.msra.mxu0 %v1941
    %2065 = vmatprep.subr.bf16.mxu0 %v1946
    %2066 = vmatpush1.bf16.msra.mxu0 %v1945
    %2067 = vmatprep.subr.bf16.mxu0 %v1950
    %2068 = vmatpush1.bf16.msra.mxu0 %v1949
    %2069 = vmatprep.subr.bf16.mxu0 %v1954
    %2070 = vmatpush1.bf16.msra.mxu0 %v1953
    %2071 = vmatprep.subr.bf16.mxu0 %v1958
    %2072 = vmatpush1.bf16.msra.mxu0 %v1957
    %2073 = vmatprep.subr.bf16.mxu0 %v1962
    %2074 = vmatpush1.bf16.msra.mxu0 %v1961
    %2075 = vmatprep.subr.bf16.mxu0 %v1966
    %2076 = vmatpush1.bf16.msra.mxu0 %v1965
    %2077 = vmatprep.subr.bf16.mxu0 %v1970
    %2078 = vmatpush1.bf16.msra.mxu0 %v1969
    %2079 = vmatprep.subr.bf16.mxu0 %v1974
    %2080 = vmatpush1.bf16.msra.mxu0 %v1973
    %2081 = vmatprep.subr.bf16.mxu0 %v1978
    %2082 = vmatpush1.bf16.msra.mxu0 %v1977
    %2083 = vmatprep.subr.bf16.mxu0 %v1982
    %2084 = vmatpush1.bf16.msra.mxu0 %v1981
    %2085 = vmatprep.subr.bf16.mxu0 %v1986
    %2086 = vmatpush1.bf16.msra.mxu0 %v1985
    %2087 = vmatprep.subr.bf16.mxu0 %v1990
    %2088 = vmatpush1.bf16.msra.mxu0 %v1989
    %2089 = vmatprep.mubr.bf16.mxu0 %v1713
    %2090 = vmatmul.mubr.bf16.gmra.mrb[0].mxu0 %v1712
    %v2091 = vpop.f32.mrb[0].mxu0
    %v2092 = vadd.f32 %v1720, %v2091
    %v2093 = vpop.f32.mrb[0].mxu0
    %v2094 = vadd.f32 %v1724, %v2093
    %v2095 = vpop.f32.mrb[0].mxu0
    %v2096 = vpop.f32.mrb[0].mxu0
    %2097 = vdwg.mxu0
    %2098 = vmatprep.subr.bf16.mxu0 %v1932
    %2099 = vmatpush1.bf16.msra.mxu0 %v1931
    %2100 = vmatprep.subr.bf16.mxu0 %v1936
    %2101 = vmatpush1.bf16.msra.mxu0 %v1935
    %2102 = vmatprep.subr.bf16.mxu0 %v1940
    %2103 = vmatpush1.bf16.msra.mxu0 %v1939
    %2104 = vmatprep.subr.bf16.mxu0 %v1944
    %2105 = vmatpush1.bf16.msra.mxu0 %v1943
    %2106 = vmatprep.subr.bf16.mxu0 %v1948
    %2107 = vmatpush1.bf16.msra.mxu0 %v1947
    %2108 = vmatprep.subr.bf16.mxu0 %v1952
    %2109 = vmatpush1.bf16.msra.mxu0 %v1951
    %2110 = vmatprep.subr.bf16.mxu0 %v1956
    %2111 = vmatpush1.bf16.msra.mxu0 %v1955
    %2112 = vmatprep.subr.bf16.mxu0 %v1960
    %2113 = vmatpush1.bf16.msra.mxu0 %v1959
    %2114 = vmatprep.subr.bf16.mxu0 %v1964
    %2115 = vmatpush1.bf16.msra.mxu0 %v1963
    %2116 = vmatprep.subr.bf16.mxu0 %v1968
    %2117 = vmatpush1.bf16.msra.mxu0 %v1967
    %2118 = vmatprep.subr.bf16.mxu0 %v1972
    %2119 = vmatpush1.bf16.msra.mxu0 %v1971
    %2120 = vmatprep.subr.bf16.mxu0 %v1976
    %2121 = vmatpush1.bf16.msra.mxu0 %v1975
    %2122 = vmatprep.subr.bf16.mxu0 %v1980
    %2123 = vmatpush1.bf16.msra.mxu0 %v1979
    %2124 = vmatprep.subr.bf16.mxu0 %v1984
    %2125 = vmatpush1.bf16.msra.mxu0 %v1983
    %2126 = vmatprep.subr.bf16.mxu0 %v1988
    %2127 = vmatpush1.bf16.msra.mxu0 %v1987
    %2128 = vmatprep.subr.bf16.mxu0 %v1992
    %2129 = vmatpush1.bf16.msra.mxu0 %v1991
    %2130 = vmatprep.mubr.bf16.mxu0 %v1713
    %2131 = vmatmul.mubr.bf16.gmra.mrb[0].mxu0 %v1712
    %v2132 = vpop.f32.mrb[0].mxu0
    %v2133 = vadd.f32 %v1728, %v2132
    %v2134 = vpop.f32.mrb[0].mxu0
    %v2135 = vadd.f32 %v1732, %v2134
    %v2136 = vpop.f32.mrb[0].mxu0
    %v2137 = vpop.f32.mrb[0].mxu0
    %2138 = vdwg.mxu0
    %vm2139 = vcmp.gt.f32.partialorder %v2092, 0.0
    %vm2140 = vcmp.gt.f32.partialorder %v2094, 0.0
    %vm2141 = vcmp.gt.f32.partialorder %v2133, 0.0
    %vm2142 = vcmp.gt.f32.partialorder %v2135, 0.0
    %v2143 = vmin.f32 %v2092, 0.0
    %v2144 = vmin.f32 %v2094, 0.0
    %v2145 = vmin.f32 %v2133, 0.0
    %v2146 = vmin.f32 %v2135, 0.0
    %v2147 = vmul.f32 %v2143, 1.442695
    %v2148 = vpow.pop %v2147
    %v2149 = vmul.f32 %v2144, 1.442695
    %v2150 = vpow.pop %v2149
    %v2151 = vmul.f32 %v2145, 1.442695
    %v2152 = vpow.pop %v2151
    %v2153 = vmul.f32 %v2146, 1.442695
    %v2154 = vpow.pop %v2153
    %v2155 = vsub.f32 %v2148, 1.0
    %v2156 = vsub.f32 %v2150, 1.0
    %v2157 = vsub.f32 %v2152, 1.0
    %v2158 = vsub.f32 %v2154, 1.0
    %v2159 = vmul.f32 %v2155, 2.0
    %v2160 = vmul.f32 %v2156, 2.0
    %v2161 = vmul.f32 %v2157, 2.0
    %v2162 = vmul.f32 %v2158, 2.0
    %v2163 = vsel %vm2139, %v2092, %v2159
    %v2164 = vsel %vm2140, %v2094, %v2160
    %v2165 = vsel %vm2141, %v2133, %v2161
    %v2166 = vsel %vm2142, %v2135, %v2162
    %v2167 = vadd.f32 %v2163, %v1119
    %v2168 = vadd.f32 %v2164, %v1120
    %v2169 = vadd.f32 %v2165, %v1119
    %v2170 = vadd.f32 %v2166, %v1120
    %v2171 = vadd.f32 %v2167, %v2169
    %v2172 = vadd.f32 %v2168, %v2170
    %v2173 = vld [vmem:[%s1] sm:$0xf]
    %v2174 = vld [vmem:[%s4] sm:$0xff]
    %v2175 = vld [vmem:[%s4 + $0x8] sm:$0xff]
    %v2176 = vld [vmem:[%s4 + $0x10] sm:$0xff]
    %v2177 = vld [vmem:[%s4 + $0x18] sm:$0xff]
    %v2178 = vld [vmem:[%s4 + $0x20] sm:$0xff]
    %v2179 = vld [vmem:[%s4 + $0x28] sm:$0xff]
    %v2180 = vld [vmem:[%s4 + $0x30] sm:$0xff]
    %v2181 = vld [vmem:[%s4 + $0x38] sm:$0xff]
    %v2182 = vld [vmem:[%s4 + $0x40] sm:$0xff]
    %v2183 = vld [vmem:[%s4 + $0x48] sm:$0xff]
    %v2184 = vld [vmem:[%s4 + $0x50] sm:$0xff]
    %v2185 = vld [vmem:[%s4 + $0x58] sm:$0xff]
    %v2186 = vld [vmem:[%s4 + $0x60] sm:$0xff]
    %v2187 = vld [vmem:[%s4 + $0x68] sm:$0xff]
    %v2188 = vld [vmem:[%s4 + $0x70] sm:$0xff]
    %v2189 = vld [vmem:[%s4 + $0x78] sm:$0xff]
    %v2190 = vld [vmem:[%s4 + $0x80] sm:$0xff]
    %v2191 = vld [vmem:[%s4 + $0x88] sm:$0xff]
    %v2192 = vld [vmem:[%s4 + $0x90] sm:$0xff]
    %v2193 = vld [vmem:[%s4 + $0x98] sm:$0xff]
    %v2194 = vld [vmem:[%s4 + $0xa0] sm:$0xff]
    %v2195 = vld [vmem:[%s4 + $0xa8] sm:$0xff]
    %v2196 = vld [vmem:[%s4 + $0xb0] sm:$0xff]
    %v2197 = vld [vmem:[%s4 + $0xb8] sm:$0xff]
    %v2198 = vld [vmem:[%s4 + $0xc0] sm:$0xff]
    %v2199 = vld [vmem:[%s4 + $0xc8] sm:$0xff]
    %v2200 = vld [vmem:[%s4 + $0xd0] sm:$0xff]
    %v2201 = vld [vmem:[%s4 + $0xd8] sm:$0xff]
    %v2202 = vld [vmem:[%s4 + $0xe0] sm:$0xff]
    %v2203 = vld [vmem:[%s4 + $0xe8] sm:$0xff]
    %v2204 = vld [vmem:[%s4 + $0xf0] sm:$0xff]
    %v2205 = vld [vmem:[%s4 + $0xf8] sm:$0xff]
    %v2208 = vunpack.c.l.s4 1983009808
    %v2209 = vunpack.c.0.s8 %v2208
    %v2210 = vlaneseq
    %v2211 = vshrl.u32 %v2210, 7
    %v2212 = vsub.s32 %v2209, %v2211
    %v2213 = vrot.slane %v2173, %v2212
    %v2214 = vcombine.high %v2213, %v2213
    %v2217 = vpack.c.bf16 %v2213, %v2213
    %v2218 = vpack.c.bf16 %v2214, %v2214
    %v2219 = vld [vmem:[%s5] sm:$0x3]
    %v2221 = vlaneseq
    %v2222 = vshrl.u32 %v2221, 7
    %v2223 = vsub.s32 0, %v2222
    %v2224 = vrot.slane %v2219, %v2223
    %v2225 = vlaneseq
    %v2226 = vshrl.u32 %v2225, 7
    %v2227 = vsub.s32 1, %v2226
    %v2228 = vrot.slane %v2219, %v2227
    %v2263 = vunpack.c.l.b16 %v2174
    %v2264 = vunpack.c.h.b16 %v2174
    %v2265 = vunpack.c.l.b16 %v2175
    %v2266 = vunpack.c.h.b16 %v2175
    %v2267 = vunpack.c.l.b16 %v2176
    %v2268 = vunpack.c.h.b16 %v2176
    %v2269 = vunpack.c.l.b16 %v2177
    %v2270 = vunpack.c.h.b16 %v2177
    %v2271 = vunpack.c.l.b16 %v2178
    %v2272 = vunpack.c.h.b16 %v2178
    %v2273 = vunpack.c.l.b16 %v2179
    %v2274 = vunpack.c.h.b16 %v2179
    %v2275 = vunpack.c.l.b16 %v2180
    %v2276 = vunpack.c.h.b16 %v2180
    %v2277 = vunpack.c.l.b16 %v2181
    %v2278 = vunpack.c.h.b16 %v2181
    %v2279 = vunpack.c.l.b16 %v2182
    %v2280 = vunpack.c.h.b16 %v2182
    %v2281 = vunpack.c.l.b16 %v2183
    %v2282 = vunpack.c.h.b16 %v2183
    %v2283 = vunpack.c.l.b16 %v2184
    %v2284 = vunpack.c.h.b16 %v2184
    %v2285 = vunpack.c.l.b16 %v2185
    %v2286 = vunpack.c.h.b16 %v2185
    %v2287 = vunpack.c.l.b16 %v2186
    %v2288 = vunpack.c.h.b16 %v2186
    %v2289 = vunpack.c.l.b16 %v2187
    %v2290 = vunpack.c.h.b16 %v2187
    %v2291 = vunpack.c.l.b16 %v2188
    %v2292 = vunpack.c.h.b16 %v2188
    %v2293 = vunpack.c.l.b16 %v2189
    %v2294 = vunpack.c.h.b16 %v2189
    %v2295 = vunpack.c.l.b16 %v2190
    %v2296 = vunpack.c.h.b16 %v2190
    %v2297 = vunpack.c.l.b16 %v2191
    %v2298 = vunpack.c.h.b16 %v2191
    %v2299 = vunpack.c.l.b16 %v2192
    %v2300 = vunpack.c.h.b16 %v2192
    %v2301 = vunpack.c.l.b16 %v2193
    %v2302 = vunpack.c.h.b16 %v2193
    %v2303 = vunpack.c.l.b16 %v2194
    %v2304 = vunpack.c.h.b16 %v2194
    %v2305 = vunpack.c.l.b16 %v2195
    %v2306 = vunpack.c.h.b16 %v2195
    %v2307 = vunpack.c.l.b16 %v2196
    %v2308 = vunpack.c.h.b16 %v2196
    %v2309 = vunpack.c.l.b16 %v2197
    %v2310 = vunpack.c.h.b16 %v2197
    %v2311 = vunpack.c.l.b16 %v2198
    %v2312 = vunpack.c.h.b16 %v2198
    %v2313 = vunpack.c.l.b16 %v2199
    %v2314 = vunpack.c.h.b16 %v2199
    %v2315 = vunpack.c.l.b16 %v2200
    %v2316 = vunpack.c.h.b16 %v2200
    %v2317 = vunpack.c.l.b16 %v2201
    %v2318 = vunpack.c.h.b16 %v2201
    %v2319 = vunpack.c.l.b16 %v2202
    %v2320 = vunpack.c.h.b16 %v2202
    %v2321 = vunpack.c.l.b16 %v2203
    %v2322 = vunpack.c.h.b16 %v2203
    %v2323 = vunpack.c.l.b16 %v2204
    %v2324 = vunpack.c.h.b16 %v2204
    %v2325 = vunpack.c.l.b16 %v2205
    %v2326 = vunpack.c.h.b16 %v2205
    %v2327 = vpack.c.b16 %v2265, %v2263
    %v2328 = vpack.c.b16 %v2266, %v2264
    %v2329 = vpack.c.b16 %v2269, %v2267
    %v2330 = vpack.c.b16 %v2270, %v2268
    %v2331 = vpack.c.b16 %v2273, %v2271
    %v2332 = vpack.c.b16 %v2274, %v2272
    %v2333 = vpack.c.b16 %v2277, %v2275
    %v2334 = vpack.c.b16 %v2278, %v2276
    %v2335 = vpack.c.b16 %v2281, %v2279
    %v2336 = vpack.c.b16 %v2282, %v2280
    %v2337 = vpack.c.b16 %v2285, %v2283
    %v2338 = vpack.c.b16 %v2286, %v2284
    %v2339 = vpack.c.b16 %v2289, %v2287
    %v2340 = vpack.c.b16 %v2290, %v2288
    %v2341 = vpack.c.b16 %v2293, %v2291
    %v2342 = vpack.c.b16 %v2294, %v2292
    %v2343 = vpack.c.b16 %v2297, %v2295
    %v2344 = vpack.c.b16 %v2298, %v2296
    %v2345 = vpack.c.b16 %v2301, %v2299
    %v2346 = vpack.c.b16 %v2302, %v2300
    %v2347 = vpack.c.b16 %v2305, %v2303
    %v2348 = vpack.c.b16 %v2306, %v2304
    %v2349 = vpack.c.b16 %v2309, %v2307
    %v2350 = vpack.c.b16 %v2310, %v2308
    %v2351 = vpack.c.b16 %v2313, %v2311
    %v2352 = vpack.c.b16 %v2314, %v2312
    %v2353 = vpack.c.b16 %v2317, %v2315
    %v2354 = vpack.c.b16 %v2318, %v2316
    %v2355 = vpack.c.b16 %v2321, %v2319
    %v2356 = vpack.c.b16 %v2322, %v2320
    %v2357 = vpack.c.b16 %v2325, %v2323
    %v2358 = vpack.c.b16 %v2326, %v2324
    %2391 = vmatprep.subr.bf16.mxu0 %v2328
    %2392 = vmatpush1.bf16.msra.mxu0 %v2327
    %2393 = vmatprep.subr.bf16.mxu0 %v2330
    %2394 = vmatpush1.bf16.msra.mxu0 %v2329
    %2395 = vmatprep.subr.bf16.mxu0 %v2332
    %2396 = vmatpush1.bf16.msra.mxu0 %v2331
    %2397 = vmatprep.subr.bf16.mxu0 %v2334
    %2398 = vmatpush1.bf16.msra.mxu0 %v2333
    %2399 = vmatprep.subr.bf16.mxu0 %v2336
    %2400 = vmatpush1.bf16.msra.mxu0 %v2335
    %2401 = vmatprep.subr.bf16.mxu0 %v2338
    %2402 = vmatpush1.bf16.msra.mxu0 %v2337
    %2403 = vmatprep.subr.bf16.mxu0 %v2340
    %2404 = vmatpush1.bf16.msra.mxu0 %v2339
    %2405 = vmatprep.subr.bf16.mxu0 %v2342
    %2406 = vmatpush1.bf16.msra.mxu0 %v2341
    %2407 = vmatprep.subr.bf16.mxu0 %v2344
    %2408 = vmatpush1.bf16.msra.mxu0 %v2343
    %2409 = vmatprep.subr.bf16.mxu0 %v2346
    %2410 = vmatpush1.bf16.msra.mxu0 %v2345
    %2411 = vmatprep.subr.bf16.mxu0 %v2348
    %2412 = vmatpush1.bf16.msra.mxu0 %v2347
    %2413 = vmatprep.subr.bf16.mxu0 %v2350
    %2414 = vmatpush1.bf16.msra.mxu0 %v2349
    %2415 = vmatprep.subr.bf16.mxu0 %v2352
    %2416 = vmatpush1.bf16.msra.mxu0 %v2351
    %2417 = vmatprep.subr.bf16.mxu0 %v2354
    %2418 = vmatpush1.bf16.msra.mxu0 %v2353
    %2419 = vmatprep.subr.bf16.mxu0 %v2356
    %2420 = vmatpush1.bf16.msra.mxu0 %v2355
    %2421 = vmatprep.subr.bf16.mxu0 %v2358
    %2422 = vmatpush1.bf16.msra.mxu0 %v2357
    %2423 = vmatprep.mubr.bf16.mxu0 %v2218
    %2424 = vmatmul.mubr.bf16.gmra.mrb[0].mxu0 %v2217
    %v2425 = vpop.f32.mrb[0].mxu0
    %v2426 = vadd.f32 %v2224, %v2425
    %v2427 = vpop.f32.mrb[0].mxu0
    %v2428 = vadd.f32 %v2228, %v2427
    %v2429 = vpop.f32.mrb[0].mxu0
    %v2430 = vpop.f32.mrb[0].mxu0
    %2431 = vdwg.mxu0
    %vm2432 = vcmp.gt.f32.partialorder %v2426, 0.0
    %vm2433 = vcmp.gt.f32.partialorder %v2428, 0.0
    %v2434 = vmin.f32 %v2426, 0.0
    %v2435 = vmin.f32 %v2428, 0.0
    %v2436 = vmul.f32 %v2434, 1.442695
    %v2437 = vpow.pop %v2436
    %v2438 = vmul.f32 %v2435, 1.442695
    %v2439 = vpow.pop %v2438
    %v2440 = vsub.f32 %v2437, 1.0
    %v2441 = vsub.f32 %v2439, 1.0
    %v2442 = vmul.f32 %v2440, 2.0
    %v2443 = vmul.f32 %v2441, 2.0
    %v2444 = vsel %vm2432, %v2426, %v2442
    %v2445 = vsel %vm2433, %v2428, %v2443
    %v2446 = vld [vmem:[%s6] sm:$0xff]
    %v2447 = vld [vmem:[%s6 + $0x8] sm:$0xff]
    %v2448 = vld [vmem:[%s6 + $0x10] sm:$0xff]
    %v2449 = vld [vmem:[%s6 + $0x18] sm:$0xff]
    %v2450 = vld [vmem:[%s6 + $0x20] sm:$0xff]
    %v2451 = vld [vmem:[%s6 + $0x28] sm:$0xff]
    %v2452 = vld [vmem:[%s6 + $0x30] sm:$0xff]
    %v2453 = vld [vmem:[%s6 + $0x38] sm:$0xff]
    %v2454 = vld [vmem:[%s6 + $0x40] sm:$0xff]
    %v2455 = vld [vmem:[%s6 + $0x48] sm:$0xff]
    %v2456 = vld [vmem:[%s6 + $0x50] sm:$0xff]
    %v2457 = vld [vmem:[%s6 + $0x58] sm:$0xff]
    %v2458 = vld [vmem:[%s6 + $0x60] sm:$0xff]
    %v2459 = vld [vmem:[%s6 + $0x68] sm:$0xff]
    %v2460 = vld [vmem:[%s6 + $0x70] sm:$0xff]
    %v2461 = vld [vmem:[%s6 + $0x78] sm:$0xff]
    %v2462 = vld [vmem:[%s6 + $0x80] sm:$0xff]
    %v2463 = vld [vmem:[%s6 + $0x88] sm:$0xff]
    %v2464 = vld [vmem:[%s6 + $0x90] sm:$0xff]
    %v2465 = vld [vmem:[%s6 + $0x98] sm:$0xff]
    %v2466 = vld [vmem:[%s6 + $0xa0] sm:$0xff]
    %v2467 = vld [vmem:[%s6 + $0xa8] sm:$0xff]
    %v2468 = vld [vmem:[%s6 + $0xb0] sm:$0xff]
    %v2469 = vld [vmem:[%s6 + $0xb8] sm:$0xff]
    %v2470 = vld [vmem:[%s6 + $0xc0] sm:$0xff]
    %v2471 = vld [vmem:[%s6 + $0xc8] sm:$0xff]
    %v2472 = vld [vmem:[%s6 + $0xd0] sm:$0xff]
    %v2473 = vld [vmem:[%s6 + $0xd8] sm:$0xff]
    %v2474 = vld [vmem:[%s6 + $0xe0] sm:$0xff]
    %v2475 = vld [vmem:[%s6 + $0xe8] sm:$0xff]
    %v2476 = vld [vmem:[%s6 + $0xf0] sm:$0xff]
    %v2477 = vld [vmem:[%s6 + $0xf8] sm:$0xff]
    %v2478 = vpack.c.bf16 %v2444, %v2444
    %v2479 = vpack.c.bf16 %v2445, %v2445
    %v2480 = vld [vmem:[%s7] sm:$0x3]
    %v2482 = vlaneseq
    %v2483 = vshrl.u32 %v2482, 7
    %v2484 = vsub.s32 0, %v2483
    %v2485 = vrot.slane %v2480, %v2484
    %v2486 = vlaneseq
    %v2487 = vshrl.u32 %v2486, 7
    %v2488 = vsub.s32 1, %v2487
    %v2489 = vrot.slane %v2480, %v2488
    %v2524 = vunpack.c.l.b16 %v2446
    %v2525 = vunpack.c.h.b16 %v2446
    %v2526 = vunpack.c.l.b16 %v2447
    %v2527 = vunpack.c.h.b16 %v2447
    %v2528 = vunpack.c.l.b16 %v2448
    %v2529 = vunpack.c.h.b16 %v2448
    %v2530 = vunpack.c.l.b16 %v2449
    %v2531 = vunpack.c.h.b16 %v2449
    %v2532 = vunpack.c.l.b16 %v2450
    %v2533 = vunpack.c.h.b16 %v2450
    %v2534 = vunpack.c.l.b16 %v2451
    %v2535 = vunpack.c.h.b16 %v2451
    %v2536 = vunpack.c.l.b16 %v2452
    %v2537 = vunpack.c.h.b16 %v2452
    %v2538 = vunpack.c.l.b16 %v2453
    %v2539 = vunpack.c.h.b16 %v2453
    %v2540 = vunpack.c.l.b16 %v2454
    %v2541 = vunpack.c.h.b16 %v2454
    %v2542 = vunpack.c.l.b16 %v2455
    %v2543 = vunpack.c.h.b16 %v2455
    %v2544 = vunpack.c.l.b16 %v2456
    %v2545 = vunpack.c.h.b16 %v2456
    %v2546 = vunpack.c.l.b16 %v2457
    %v2547 = vunpack.c.h.b16 %v2457
    %v2548 = vunpack.c.l.b16 %v2458
    %v2549 = vunpack.c.h.b16 %v2458
    %v2550 = vunpack.c.l.b16 %v2459
    %v2551 = vunpack.c.h.b16 %v2459
    %v2552 = vunpack.c.l.b16 %v2460
    %v2553 = vunpack.c.h.b16 %v2460
    %v2554 = vunpack.c.l.b16 %v2461
    %v2555 = vunpack.c.h.b16 %v2461
    %v2556 = vunpack.c.l.b16 %v2462
    %v2557 = vunpack.c.h.b16 %v2462
    %v2558 = vunpack.c.l.b16 %v2463
    %v2559 = vunpack.c.h.b16 %v2463
    %v2560 = vunpack.c.l.b16 %v2464
    %v2561 = vunpack.c.h.b16 %v2464
    %v2562 = vunpack.c.l.b16 %v2465
    %v2563 = vunpack.c.h.b16 %v2465
    %v2564 = vunpack.c.l.b16 %v2466
    %v2565 = vunpack.c.h.b16 %v2466
    %v2566 = vunpack.c.l.b16 %v2467
    %v2567 = vunpack.c.h.b16 %v2467
    %v2568 = vunpack.c.l.b16 %v2468
    %v2569 = vunpack.c.h.b16 %v2468
    %v2570 = vunpack.c.l.b16 %v2469
    %v2571 = vunpack.c.h.b16 %v2469
    %v2572 = vunpack.c.l.b16 %v2470
    %v2573 = vunpack.c.h.b16 %v2470
    %v2574 = vunpack.c.l.b16 %v2471
    %v2575 = vunpack.c.h.b16 %v2471
    %v2576 = vunpack.c.l.b16 %v2472
    %v2577 = vunpack.c.h.b16 %v2472
    %v2578 = vunpack.c.l.b16 %v2473
    %v2579 = vunpack.c.h.b16 %v2473
    %v2580 = vunpack.c.l.b16 %v2474
    %v2581 = vunpack.c.h.b16 %v2474
    %v2582 = vunpack.c.l.b16 %v2475
    %v2583 = vunpack.c.h.b16 %v2475
    %v2584 = vunpack.c.l.b16 %v2476
    %v2585 = vunpack.c.h.b16 %v2476
    %v2586 = vunpack.c.l.b16 %v2477
    %v2587 = vunpack.c.h.b16 %v2477
    %v2588 = vpack.c.b16 %v2526, %v2524
    %v2589 = vpack.c.b16 %v2527, %v2525
    %v2590 = vpack.c.b16 %v2530, %v2528
    %v2591 = vpack.c.b16 %v2531, %v2529
    %v2592 = vpack.c.b16 %v2534, %v2532
    %v2593 = vpack.c.b16 %v2535, %v2533
    %v2594 = vpack.c.b16 %v2538, %v2536
    %v2595 = vpack.c.b16 %v2539, %v2537
    %v2596 = vpack.c.b16 %v2542, %v2540
    %v2597 = vpack.c.b16 %v2543, %v2541
    %v2598 = vpack.c.b16 %v2546, %v2544
    %v2599 = vpack.c.b16 %v2547, %v2545
    %v2600 = vpack.c.b16 %v2550, %v2548
    %v2601 = vpack.c.b16 %v2551, %v2549
    %v2602 = vpack.c.b16 %v2554, %v2552
    %v2603 = vpack.c.b16 %v2555, %v2553
    %v2604 = vpack.c.b16 %v2558, %v2556
    %v2605 = vpack.c.b16 %v2559, %v2557
    %v2606 = vpack.c.b16 %v2562, %v2560
    %v2607 = vpack.c.b16 %v2563, %v2561
    %v2608 = vpack.c.b16 %v2566, %v2564
    %v2609 = vpack.c.b16 %v2567, %v2565
    %v2610 = vpack.c.b16 %v2570, %v2568
    %v2611 = vpack.c.b16 %v2571, %v2569
    %v2612 = vpack.c.b16 %v2574, %v2572
    %v2613 = vpack.c.b16 %v2575, %v2573
    %v2614 = vpack.c.b16 %v2578, %v2576
    %v2615 = vpack.c.b16 %v2579, %v2577
    %v2616 = vpack.c.b16 %v2582, %v2580
    %v2617 = vpack.c.b16 %v2583, %v2581
    %v2618 = vpack.c.b16 %v2586, %v2584
    %v2619 = vpack.c.b16 %v2587, %v2585
    %2652 = vmatprep.subr.bf16.mxu0 %v2589
    %2653 = vmatpush1.bf16.msra.mxu0 %v2588
    %2654 = vmatprep.subr.bf16.mxu0 %v2591
    %2655 = vmatpush1.bf16.msra.mxu0 %v2590
    %2656 = vmatprep.subr.bf16.mxu0 %v2593
    %2657 = vmatpush1.bf16.msra.mxu0 %v2592
    %2658 = vmatprep.subr.bf16.mxu0 %v2595
    %2659 = vmatpush1.bf16.msra.mxu0 %v2594
    %2660 = vmatprep.subr.bf16.mxu0 %v2597
    %2661 = vmatpush1.bf16.msra.mxu0 %v2596
    %2662 = vmatprep.subr.bf16.mxu0 %v2599
    %2663 = vmatpush1.bf16.msra.mxu0 %v2598
    %2664 = vmatprep.subr.bf16.mxu0 %v2601
    %2665 = vmatpush1.bf16.msra.mxu0 %v2600
    %2666 = vmatprep.subr.bf16.mxu0 %v2603
    %2667 = vmatpush1.bf16.msra.mxu0 %v2602
    %2668 = vmatprep.subr.bf16.mxu0 %v2605
    %2669 = vmatpush1.bf16.msra.mxu0 %v2604
    %2670 = vmatprep.subr.bf16.mxu0 %v2607
    %2671 = vmatpush1.bf16.msra.mxu0 %v2606
    %2672 = vmatprep.subr.bf16.mxu0 %v2609
    %2673 = vmatpush1.bf16.msra.mxu0 %v2608
    %2674 = vmatprep.subr.bf16.mxu0 %v2611
    %2675 = vmatpush1.bf16.msra.mxu0 %v2610
    %2676 = vmatprep.subr.bf16.mxu0 %v2613
    %2677 = vmatpush1.bf16.msra.mxu0 %v2612
    %2678 = vmatprep.subr.bf16.mxu0 %v2615
    %2679 = vmatpush1.bf16.msra.mxu0 %v2614
    %2680 = vmatprep.subr.bf16.mxu0 %v2617
    %2681 = vmatpush1.bf16.msra.mxu0 %v2616
    %2682 = vmatprep.subr.bf16.mxu0 %v2619
    %2683 = vmatpush1.bf16.msra.mxu0 %v2618
    %2684 = vmatprep.mubr.bf16.mxu0 %v2479
    %2685 = vmatmul.mubr.bf16.gmra.mrb[0].mxu0 %v2478
    %v2686 = vpop.f32.mrb[0].mxu0
    %v2687 = vadd.f32 %v2485, %v2686
    %v2688 = vpop.f32.mrb[0].mxu0
    %v2689 = vadd.f32 %v2489, %v2688
    %v2690 = vpop.f32.mrb[0].mxu0
    %v2691 = vpop.f32.mrb[0].mxu0
    %2692 = vdwg.mxu0
    %vm2693 = vcmp.gt.f32.partialorder %v2687, 0.0
    %vm2694 = vcmp.gt.f32.partialorder %v2689, 0.0
    %v2695 = vmin.f32 %v2687, 0.0
    %v2696 = vmin.f32 %v2689, 0.0
    %v2697 = vmul.f32 %v2695, 1.442695
    %v2698 = vpow.pop %v2697
    %v2699 = vmul.f32 %v2696, 1.442695
    %v2700 = vpow.pop %v2699
    %v2701 = vsub.f32 %v2698, 1.0
    %v2702 = vsub.f32 %v2700, 1.0
    %v2703 = vmul.f32 %v2701, 2.0
    %v2704 = vmul.f32 %v2702, 2.0
    %v2705 = vsel %vm2693, %v2687, %v2703
    %v2706 = vsel %vm2694, %v2689, %v2704
    %v2707 = vld [vmem:[%s8] sm:$0xff]
    %v2708 = vld [vmem:[%s8 + $0x8] sm:$0xff]
    %v2709 = vld [vmem:[%s8 + $0x10] sm:$0xff]
    %v2710 = vld [vmem:[%s8 + $0x18] sm:$0xff]
    %v2711 = vld [vmem:[%s8 + $0x20] sm:$0xff]
    %v2712 = vld [vmem:[%s8 + $0x28] sm:$0xff]
    %v2713 = vld [vmem:[%s8 + $0x30] sm:$0xff]
    %v2714 = vld [vmem:[%s8 + $0x38] sm:$0xff]
    %v2715 = vld [vmem:[%s8 + $0x40] sm:$0xff]
    %v2716 = vld [vmem:[%s8 + $0x48] sm:$0xff]
    %v2717 = vld [vmem:[%s8 + $0x50] sm:$0xff]
    %v2718 = vld [vmem:[%s8 + $0x58] sm:$0xff]
    %v2719 = vld [vmem:[%s8 + $0x60] sm:$0xff]
    %v2720 = vld [vmem:[%s8 + $0x68] sm:$0xff]
    %v2721 = vld [vmem:[%s8 + $0x70] sm:$0xff]
    %v2722 = vld [vmem:[%s8 + $0x78] sm:$0xff]
    %v2723 = vld [vmem:[%s8 + $0x80] sm:$0xff]
    %v2724 = vld [vmem:[%s8 + $0x88] sm:$0xff]
    %v2725 = vld [vmem:[%s8 + $0x90] sm:$0xff]
    %v2726 = vld [vmem:[%s8 + $0x98] sm:$0xff]
    %v2727 = vld [vmem:[%s8 + $0xa0] sm:$0xff]
    %v2728 = vld [vmem:[%s8 + $0xa8] sm:$0xff]
    %v2729 = vld [vmem:[%s8 + $0xb0] sm:$0xff]
    %v2730 = vld [vmem:[%s8 + $0xb8] sm:$0xff]
    %v2731 = vld [vmem:[%s8 + $0xc0] sm:$0xff]
    %v2732 = vld [vmem:[%s8 + $0xc8] sm:$0xff]
    %v2733 = vld [vmem:[%s8 + $0xd0] sm:$0xff]
    %v2734 = vld [vmem:[%s8 + $0xd8] sm:$0xff]
    %v2735 = vld [vmem:[%s8 + $0xe0] sm:$0xff]
    %v2736 = vld [vmem:[%s8 + $0xe8] sm:$0xff]
    %v2737 = vld [vmem:[%s8 + $0xf0] sm:$0xff]
    %v2738 = vld [vmem:[%s8 + $0xf8] sm:$0xff]
    %v2739 = vpack.c.bf16 %v2171, %v2171
    %v2740 = vpack.c.bf16 %v2172, %v2172
    %v2741 = vld [vmem:[%s9] sm:$0x3]
    %v2743 = vlaneseq
    %v2744 = vshrl.u32 %v2743, 7
    %v2745 = vsub.s32 0, %v2744
    %v2746 = vrot.slane %v2741, %v2745
    %v2747 = vlaneseq
    %v2748 = vshrl.u32 %v2747, 7
    %v2749 = vsub.s32 1, %v2748
    %v2750 = vrot.slane %v2741, %v2749
    %v2785 = vunpack.c.l.b16 %v2707
    %v2786 = vunpack.c.h.b16 %v2707
    %v2787 = vunpack.c.l.b16 %v2708
    %v2788 = vunpack.c.h.b16 %v2708
    %v2789 = vunpack.c.l.b16 %v2709
    %v2790 = vunpack.c.h.b16 %v2709
    %v2791 = vunpack.c.l.b16 %v2710
    %v2792 = vunpack.c.h.b16 %v2710
    %v2793 = vunpack.c.l.b16 %v2711
    %v2794 = vunpack.c.h.b16 %v2711
    %v2795 = vunpack.c.l.b16 %v2712
    %v2796 = vunpack.c.h.b16 %v2712
    %v2797 = vunpack.c.l.b16 %v2713
    %v2798 = vunpack.c.h.b16 %v2713
    %v2799 = vunpack.c.l.b16 %v2714
    %v2800 = vunpack.c.h.b16 %v2714
    %v2801 = vunpack.c.l.b16 %v2715
    %v2802 = vunpack.c.h.b16 %v2715
    %v2803 = vunpack.c.l.b16 %v2716
    %v2804 = vunpack.c.h.b16 %v2716
    %v2805 = vunpack.c.l.b16 %v2717
    %v2806 = vunpack.c.h.b16 %v2717
    %v2807 = vunpack.c.l.b16 %v2718
    %v2808 = vunpack.c.h.b16 %v2718
    %v2809 = vunpack.c.l.b16 %v2719
    %v2810 = vunpack.c.h.b16 %v2719
    %v2811 = vunpack.c.l.b16 %v2720
    %v2812 = vunpack.c.h.b16 %v2720
    %v2813 = vunpack.c.l.b16 %v2721
    %v2814 = vunpack.c.h.b16 %v2721
    %v2815 = vunpack.c.l.b16 %v2722
    %v2816 = vunpack.c.h.b16 %v2722
    %v2817 = vunpack.c.l.b16 %v2723
    %v2818 = vunpack.c.h.b16 %v2723
    %v2819 = vunpack.c.l.b16 %v2724
    %v2820 = vunpack.c.h.b16 %v2724
    %v2821 = vunpack.c.l.b16 %v2725
    %v2822 = vunpack.c.h.b16 %v2725
    %v2823 = vunpack.c.l.b16 %v2726
    %v2824 = vunpack.c.h.b16 %v2726
    %v2825 = vunpack.c.l.b16 %v2727
    %v2826 = vunpack.c.h.b16 %v2727
    %v2827 = vunpack.c.l.b16 %v2728
    %v2828 = vunpack.c.h.b16 %v2728
    %v2829 = vunpack.c.l.b16 %v2729
    %v2830 = vunpack.c.h.b16 %v2729
    %v2831 = vunpack.c.l.b16 %v2730
    %v2832 = vunpack.c.h.b16 %v2730
    %v2833 = vunpack.c.l.b16 %v2731
    %v2834 = vunpack.c.h.b16 %v2731
    %v2835 = vunpack.c.l.b16 %v2732
    %v2836 = vunpack.c.h.b16 %v2732
    %v2837 = vunpack.c.l.b16 %v2733
    %v2838 = vunpack.c.h.b16 %v2733
    %v2839 = vunpack.c.l.b16 %v2734
    %v2840 = vunpack.c.h.b16 %v2734
    %v2841 = vunpack.c.l.b16 %v2735
    %v2842 = vunpack.c.h.b16 %v2735
    %v2843 = vunpack.c.l.b16 %v2736
    %v2844 = vunpack.c.h.b16 %v2736
    %v2845 = vunpack.c.l.b16 %v2737
    %v2846 = vunpack.c.h.b16 %v2737
    %v2847 = vunpack.c.l.b16 %v2738
    %v2848 = vunpack.c.h.b16 %v2738
    %v2849 = vpack.c.b16 %v2787, %v2785
    %v2850 = vpack.c.b16 %v2788, %v2786
    %v2851 = vpack.c.b16 %v2791, %v2789
    %v2852 = vpack.c.b16 %v2792, %v2790
    %v2853 = vpack.c.b16 %v2795, %v2793
    %v2854 = vpack.c.b16 %v2796, %v2794
    %v2855 = vpack.c.b16 %v2799, %v2797
    %v2856 = vpack.c.b16 %v2800, %v2798
    %v2857 = vpack.c.b16 %v2803, %v2801
    %v2858 = vpack.c.b16 %v2804, %v2802
    %v2859 = vpack.c.b16 %v2807, %v2805
    %v2860 = vpack.c.b16 %v2808, %v2806
    %v2861 = vpack.c.b16 %v2811, %v2809
    %v2862 = vpack.c.b16 %v2812, %v2810
    %v2863 = vpack.c.b16 %v2815, %v2813
    %v2864 = vpack.c.b16 %v2816, %v2814
    %v2865 = vpack.c.b16 %v2819, %v2817
    %v2866 = vpack.c.b16 %v2820, %v2818
    %v2867 = vpack.c.b16 %v2823, %v2821
    %v2868 = vpack.c.b16 %v2824, %v2822
    %v2869 = vpack.c.b16 %v2827, %v2825
    %v2870 = vpack.c.b16 %v2828, %v2826
    %v2871 = vpack.c.b16 %v2831, %v2829
    %v2872 = vpack.c.b16 %v2832, %v2830
    %v2873 = vpack.c.b16 %v2835, %v2833
    %v2874 = vpack.c.b16 %v2836, %v2834
    %v2875 = vpack.c.b16 %v2839, %v2837
    %v2876 = vpack.c.b16 %v2840, %v2838
    %v2877 = vpack.c.b16 %v2843, %v2841
    %v2878 = vpack.c.b16 %v2844, %v2842
    %v2879 = vpack.c.b16 %v2847, %v2845
    %v2880 = vpack.c.b16 %v2848, %v2846
    %2913 = vmatprep.subr.bf16.mxu0 %v2850
    %2914 = vmatpush1.bf16.msra.mxu0 %v2849
    %2915 = vmatprep.subr.bf16.mxu0 %v2852
    %2916 = vmatpush1.bf16.msra.mxu0 %v2851
    %2917 = vmatprep.subr.bf16.mxu0 %v2854
    %2918 = vmatpush1.bf16.msra.mxu0 %v2853
    %2919 = vmatprep.subr.bf16.mxu0 %v2856
    %2920 = vmatpush1.bf16.msra.mxu0 %v2855
    %2921 = vmatprep.subr.bf16.mxu0 %v2858
    %2922 = vmatpush1.bf16.msra.mxu0 %v2857
    %2923 = vmatprep.subr.bf16.mxu0 %v2860
    %2924 = vmatpush1.bf16.msra.mxu0 %v2859
    %2925 = vmatprep.subr.bf16.mxu0 %v2862
    %2926 = vmatpush1.bf16.msra.mxu0 %v2861
    %2927 = vmatprep.subr.bf16.mxu0 %v2864
    %2928 = vmatpush1.bf16.msra.mxu0 %v2863
    %2929 = vmatprep.subr.bf16.mxu0 %v2866
    %2930 = vmatpush1.bf16.msra.mxu0 %v2865
    %2931 = vmatprep.subr.bf16.mxu0 %v2868
    %2932 = vmatpush1.bf16.msra.mxu0 %v2867
    %2933 = vmatprep.subr.bf16.mxu0 %v2870
    %2934 = vmatpush1.bf16.msra.mxu0 %v2869
    %2935 = vmatprep.subr.bf16.mxu0 %v2872
    %2936 = vmatpush1.bf16.msra.mxu0 %v2871
    %2937 = vmatprep.subr.bf16.mxu0 %v2874
    %2938 = vmatpush1.bf16.msra.mxu0 %v2873
    %2939 = vmatprep.subr.bf16.mxu0 %v2876
    %2940 = vmatpush1.bf16.msra.mxu0 %v2875
    %2941 = vmatprep.subr.bf16.mxu0 %v2878
    %2942 = vmatpush1.bf16.msra.mxu0 %v2877
    %2943 = vmatprep.subr.bf16.mxu0 %v2880
    %2944 = vmatpush1.bf16.msra.mxu0 %v2879
    %2945 = vmatprep.mubr.bf16.mxu0 %v2740
    %2946 = vmatmul.mubr.bf16.gmra.mrb[0].mxu0 %v2739
    %v2947 = vpop.f32.mrb[0].mxu0
    %v2948 = vadd.f32 %v2746, %v2947
    %v2949 = vpop.f32.mrb[0].mxu0
    %v2950 = vadd.f32 %v2750, %v2949
    %v2951 = vpop.f32.mrb[0].mxu0
    %v2952 = vpop.f32.mrb[0].mxu0
    %2953 = vdwg.mxu0
    %vm2954 = vcmp.gt.f32.partialorder %v2948, 0.0
    %vm2955 = vcmp.gt.f32.partialorder %v2950, 0.0
    %v2956 = vmin.f32 %v2948, 0.0
    %v2957 = vmin.f32 %v2950, 0.0
    %v2958 = vmul.f32 %v2956, 1.442695
    %v2959 = vpow.pop %v2958
    %v2960 = vmul.f32 %v2957, 1.442695
    %v2961 = vpow.pop %v2960
    %v2962 = vsub.f32 %v2959, 1.0
    %v2963 = vsub.f32 %v2961, 1.0
    %v2964 = vmul.f32 %v2962, 2.0
    %v2965 = vmul.f32 %v2963, 2.0
    %v2966 = vsel %vm2954, %v2948, %v2964
    %v2967 = vsel %vm2955, %v2950, %v2965
    %v2968 = vadd.f32 %v2966, %v2705
    %v2969 = vadd.f32 %v2967, %v2706
    %v2970 = vld [vmem:[%s10] sm:$0xff]
    %v2971 = vld [vmem:[%s10 + $0x8] sm:$0xff]
    %v2972 = vld [vmem:[%s10 + $0x10] sm:$0xff]
    %v2973 = vld [vmem:[%s10 + $0x18] sm:$0xff]
    %v2974 = vld [vmem:[%s10 + $0x20] sm:$0xff]
    %v2975 = vld [vmem:[%s10 + $0x28] sm:$0xff]
    %v2976 = vld [vmem:[%s10 + $0x30] sm:$0xff]
    %v2977 = vld [vmem:[%s10 + $0x38] sm:$0xff]
    %v2978 = vld [vmem:[%s10 + $0x40] sm:$0xff]
    %v2979 = vld [vmem:[%s10 + $0x48] sm:$0xff]
    %v2980 = vld [vmem:[%s10 + $0x50] sm:$0xff]
    %v2981 = vld [vmem:[%s10 + $0x58] sm:$0xff]
    %v2982 = vld [vmem:[%s10 + $0x60] sm:$0xff]
    %v2983 = vld [vmem:[%s10 + $0x68] sm:$0xff]
    %v2984 = vld [vmem:[%s10 + $0x70] sm:$0xff]
    %v2985 = vld [vmem:[%s10 + $0x78] sm:$0xff]
    %v2986 = vld [vmem:[%s10 + $0x80] sm:$0xff]
    %v2987 = vld [vmem:[%s10 + $0x88] sm:$0xff]
    %v2988 = vld [vmem:[%s10 + $0x90] sm:$0xff]
    %v2989 = vld [vmem:[%s10 + $0x98] sm:$0xff]
    %v2990 = vld [vmem:[%s10 + $0xa0] sm:$0xff]
    %v2991 = vld [vmem:[%s10 + $0xa8] sm:$0xff]
    %v2992 = vld [vmem:[%s10 + $0xb0] sm:$0xff]
    %v2993 = vld [vmem:[%s10 + $0xb8] sm:$0xff]
    %v2994 = vld [vmem:[%s10 + $0xc0] sm:$0xff]
    %v2995 = vld [vmem:[%s10 + $0xc8] sm:$0xff]
    %v2996 = vld [vmem:[%s10 + $0xd0] sm:$0xff]
    %v2997 = vld [vmem:[%s10 + $0xd8] sm:$0xff]
    %v2998 = vld [vmem:[%s10 + $0xe0] sm:$0xff]
    %v2999 = vld [vmem:[%s10 + $0xe8] sm:$0xff]
    %v3000 = vld [vmem:[%s10 + $0xf0] sm:$0xff]
    %v3001 = vld [vmem:[%s10 + $0xf8] sm:$0xff]
    %v3002 = vpack.c.bf16 %v2968, %v2968
    %v3003 = vpack.c.bf16 %v2969, %v2969
    %v3004 = vld [vmem:[%s11] sm:$0x3]
    %v3006 = vlaneseq
    %v3007 = vshrl.u32 %v3006, 7
    %v3008 = vsub.s32 0, %v3007
    %v3009 = vrot.slane %v3004, %v3008
    %v3010 = vlaneseq
    %v3011 = vshrl.u32 %v3010, 7
    %v3012 = vsub.s32 1, %v3011
    %v3013 = vrot.slane %v3004, %v3012
    %v3048 = vunpack.c.l.b16 %v2970
    %v3049 = vunpack.c.h.b16 %v2970
    %v3050 = vunpack.c.l.b16 %v2971
    %v3051 = vunpack.c.h.b16 %v2971
    %v3052 = vunpack.c.l.b16 %v2972
    %v3053 = vunpack.c.h.b16 %v2972
    %v3054 = vunpack.c.l.b16 %v2973
    %v3055 = vunpack.c.h.b16 %v2973
    %v3056 = vunpack.c.l.b16 %v2974
    %v3057 = vunpack.c.h.b16 %v2974
    %v3058 = vunpack.c.l.b16 %v2975
    %v3059 = vunpack.c.h.b16 %v2975
    %v3060 = vunpack.c.l.b16 %v2976
    %v3061 = vunpack.c.h.b16 %v2976
    %v3062 = vunpack.c.l.b16 %v2977
    %v3063 = vunpack.c.h.b16 %v2977
    %v3064 = vunpack.c.l.b16 %v2978
    %v3065 = vunpack.c.h.b16 %v2978
    %v3066 = vunpack.c.l.b16 %v2979
    %v3067 = vunpack.c.h.b16 %v2979
    %v3068 = vunpack.c.l.b16 %v2980
    %v3069 = vunpack.c.h.b16 %v2980
    %v3070 = vunpack.c.l.b16 %v2981
    %v3071 = vunpack.c.h.b16 %v2981
    %v3072 = vunpack.c.l.b16 %v2982
    %v3073 = vunpack.c.h.b16 %v2982
    %v3074 = vunpack.c.l.b16 %v2983
    %v3075 = vunpack.c.h.b16 %v2983
    %v3076 = vunpack.c.l.b16 %v2984
    %v3077 = vunpack.c.h.b16 %v2984
    %v3078 = vunpack.c.l.b16 %v2985
    %v3079 = vunpack.c.h.b16 %v2985
    %v3080 = vunpack.c.l.b16 %v2986
    %v3081 = vunpack.c.h.b16 %v2986
    %v3082 = vunpack.c.l.b16 %v2987
    %v3083 = vunpack.c.h.b16 %v2987
    %v3084 = vunpack.c.l.b16 %v2988
    %v3085 = vunpack.c.h.b16 %v2988
    %v3086 = vunpack.c.l.b16 %v2989
    %v3087 = vunpack.c.h.b16 %v2989
    %v3088 = vunpack.c.l.b16 %v2990
    %v3089 = vunpack.c.h.b16 %v2990
    %v3090 = vunpack.c.l.b16 %v2991
    %v3091 = vunpack.c.h.b16 %v2991
    %v3092 = vunpack.c.l.b16 %v2992
    %v3093 = vunpack.c.h.b16 %v2992
    %v3094 = vunpack.c.l.b16 %v2993
    %v3095 = vunpack.c.h.b16 %v2993
    %v3096 = vunpack.c.l.b16 %v2994
    %v3097 = vunpack.c.h.b16 %v2994
    %v3098 = vunpack.c.l.b16 %v2995
    %v3099 = vunpack.c.h.b16 %v2995
    %v3100 = vunpack.c.l.b16 %v2996
    %v3101 = vunpack.c.h.b16 %v2996
    %v3102 = vunpack.c.l.b16 %v2997
    %v3103 = vunpack.c.h.b16 %v2997
    %v3104 = vunpack.c.l.b16 %v2998
    %v3105 = vunpack.c.h.b16 %v2998
    %v3106 = vunpack.c.l.b16 %v2999
    %v3107 = vunpack.c.h.b16 %v2999
    %v3108 = vunpack.c.l.b16 %v3000
    %v3109 = vunpack.c.h.b16 %v3000
    %v3110 = vunpack.c.l.b16 %v3001
    %v3111 = vunpack.c.h.b16 %v3001
    %v3112 = vpack.c.b16 %v3050, %v3048
    %v3113 = vpack.c.b16 %v3051, %v3049
    %v3114 = vpack.c.b16 %v3054, %v3052
    %v3115 = vpack.c.b16 %v3055, %v3053
    %v3116 = vpack.c.b16 %v3058, %v3056
    %v3117 = vpack.c.b16 %v3059, %v3057
    %v3118 = vpack.c.b16 %v3062, %v3060
    %v3119 = vpack.c.b16 %v3063, %v3061
    %v3120 = vpack.c.b16 %v3066, %v3064
    %v3121 = vpack.c.b16 %v3067, %v3065
    %v3122 = vpack.c.b16 %v3070, %v3068
    %v3123 = vpack.c.b16 %v3071, %v3069
    %v3124 = vpack.c.b16 %v3074, %v3072
    %v3125 = vpack.c.b16 %v3075, %v3073
    %v3126 = vpack.c.b16 %v3078, %v3076
    %v3127 = vpack.c.b16 %v3079, %v3077
    %v3128 = vpack.c.b16 %v3082, %v3080
    %v3129 = vpack.c.b16 %v3083, %v3081
    %v3130 = vpack.c.b16 %v3086, %v3084
    %v3131 = vpack.c.b16 %v3087, %v3085
    %v3132 = vpack.c.b16 %v3090, %v3088
    %v3133 = vpack.c.b16 %v3091, %v3089
    %v3134 = vpack.c.b16 %v3094, %v3092
    %v3135 = vpack.c.b16 %v3095, %v3093
    %v3136 = vpack.c.b16 %v3098, %v3096
    %v3137 = vpack.c.b16 %v3099, %v3097
    %v3138 = vpack.c.b16 %v3102, %v3100
    %v3139 = vpack.c.b16 %v3103, %v3101
    %v3140 = vpack.c.b16 %v3106, %v3104
    %v3141 = vpack.c.b16 %v3107, %v3105
    %v3142 = vpack.c.b16 %v3110, %v3108
    %v3143 = vpack.c.b16 %v3111, %v3109
    %3176 = vmatprep.subr.bf16.mxu0 %v3113
    %3177 = vmatpush1.bf16.msra.mxu0 %v3112
    %3178 = vmatprep.subr.bf16.mxu0 %v3115
    %3179 = vmatpush1.bf16.msra.mxu0 %v3114
    %3180 = vmatprep.subr.bf16.mxu0 %v3117
    %3181 = vmatpush1.bf16.msra.mxu0 %v3116
    %3182 = vmatprep.subr.bf16.mxu0 %v3119
    %3183 = vmatpush1.bf16.msra.mxu0 %v3118
    %3184 = vmatprep.subr.bf16.mxu0 %v3121
    %3185 = vmatpush1.bf16.msra.mxu0 %v3120
    %3186 = vmatprep.subr.bf16.mxu0 %v3123
    %3187 = vmatpush1.bf16.msra.mxu0 %v3122
    %3188 = vmatprep.subr.bf16.mxu0 %v3125
    %3189 = vmatpush1.bf16.msra.mxu0 %v3124
    %3190 = vmatprep.subr.bf16.mxu0 %v3127
    %3191 = vmatpush1.bf16.msra.mxu0 %v3126
    %3192 = vmatprep.subr.bf16.mxu0 %v3129
    %3193 = vmatpush1.bf16.msra.mxu0 %v3128
    %3194 = vmatprep.subr.bf16.mxu0 %v3131
    %3195 = vmatpush1.bf16.msra.mxu0 %v3130
    %3196 = vmatprep.subr.bf16.mxu0 %v3133
    %3197 = vmatpush1.bf16.msra.mxu0 %v3132
    %3198 = vmatprep.subr.bf16.mxu0 %v3135
    %3199 = vmatpush1.bf16.msra.mxu0 %v3134
    %3200 = vmatprep.subr.bf16.mxu0 %v3137
    %3201 = vmatpush1.bf16.msra.mxu0 %v3136
    %3202 = vmatprep.subr.bf16.mxu0 %v3139
    %3203 = vmatpush1.bf16.msra.mxu0 %v3138
    %3204 = vmatprep.subr.bf16.mxu0 %v3141
    %3205 = vmatpush1.bf16.msra.mxu0 %v3140
    %3206 = vmatprep.subr.bf16.mxu0 %v3143
    %3207 = vmatpush1.bf16.msra.mxu0 %v3142
    %3208 = vmatprep.mubr.bf16.mxu0 %v3003
    %3209 = vmatmul.mubr.bf16.gmra.mrb[0].mxu0 %v3002
    %v3210 = vpop.f32.mrb[0].mxu0
    %v3211 = vadd.f32 %v3009, %v3210
    %v3212 = vpop.f32.mrb[0].mxu0
    %v3213 = vadd.f32 %v3013, %v3212
    %v3214 = vpop.f32.mrb[0].mxu0
    %v3215 = vpop.f32.mrb[0].mxu0
    %3216 = vdwg.mxu0
    %vm3217 = vcmp.gt.f32.partialorder %v3211, 0.0
    %vm3218 = vcmp.gt.f32.partialorder %v3213, 0.0
    %v3219 = vmin.f32 %v3211, 0.0
    %v3220 = vmin.f32 %v3213, 0.0
    %v3221 = vmul.f32 %v3219, 1.442695
    %v3222 = vpow.pop %v3221
    %v3223 = vmul.f32 %v3220, 1.442695
    %v3224 = vpow.pop %v3223
    %v3225 = vsub.f32 %v3222, 1.0
    %v3226 = vsub.f32 %v3224, 1.0
    %v3227 = vmul.f32 %v3225, 2.0
    %v3228 = vmul.f32 %v3226, 2.0
    %v3229 = vsel %vm3217, %v3211, %v3227
    %v3230 = vsel %vm3218, %v3213, %v3228
    %v3231 = vld [vmem:[%s12] sm:$0x3]
    %v3233 = vlaneseq
    %v3234 = vshrl.u32 %v3233, 7
    %v3235 = vsub.s32 0, %v3234
    %v3236 = vrot.slane %v3231, %v3235
    %v3237 = vlaneseq
    %v3238 = vshrl.u32 %v3237, 7
    %v3239 = vsub.s32 1, %v3238
    %v3240 = vrot.slane %v3231, %v3239
    %v3243 = vmul.f32 %v3229, %v3236
    %v3244 = vmul.f32 %v3230, %v3240
    %vm3245 = vcmask 1041408
    %v3246 = vsel %vm3245, %v3243, 0.0
    %v3247 = vsel %vm3245, %v3244, 0.0
    %v3248 = vadd.f32 %v3246, %v3247
    %3249 = vadd.xlane.f32.xlu0 %v3248
    %v3250 = vpop.xlane.xlu0 %3249
    %v3251 = vld [vmem:[#allocation2] sm:$0x1]
    %v3253 = vlaneseq
    %v3254 = vshrl.u32 %v3253, 7
    %v3255 = vsub.s32 0, %v3254
    %v3256 = vrot.slane %v3251, %v3255
    %v3258 = vadd.f32 %v3250, %v3256
    %v3259 = vsub.f32 0.0, %v3258
    %v3260 = vmul.f32 %v3259, 1.442695
    %v3261 = vpow.pop %v3260
    %v3262 = vadd.f32 %v3261, 1.0
    %v3263 = vrcp.pop %v3262
    %v3264 = vmul.f32 1.0, %v3263
    %vm3265 = vcmask 1024
    %3266 = vst.msk [vmem:[%s14] sm:$0x3] %vm3265, %v3264
    // Predicated region
    $region62: #{discriminator_forward.1} parent=1 // pred_check
      _
    $region63: #{discriminator_forward.1} parent=1 // pred_check_branch
      %3268 = sbr.rel (0) target = $region65
    $region64: #{discriminator_forward.1} parent=1 // pred_region
      _
    $region65: #{discriminator_forward.1} parent=1 // pred_fallthru
      _
    // Predicated region
    $region66: #{discriminator_forward.1} parent=1 // pred_check
      _
    $region67: #{discriminator_forward.1} parent=1 // pred_check_branch
      %3270 = sbr.rel (0) target = $region69
    $region68: #{discriminator_forward.1} parent=1 // pred_region
      _
    $region69: #{discriminator_forward.1} parent=1 // pred_fallthru
      _
    %3271 = vsyncpa [#allocation4], 1

</llo_original>
